<compile_context>
chip_gen: v6e
topology: v6e:2x2x1
jax: 0.10.0
libtpu: 0.0.40
codegen_flags: <defaults>
</compile_context>

<pallas_src>
import jax
import jax.numpy as jnp
from jax.experimental import pallas as pl
from jax.experimental.pallas import tpu as pltpu

NEG_SLOPE = 0.001  # matches nn.LeakyReLU(0.001) in the PyTorch module


def _leaky_relu(x, slope=NEG_SLOPE):
    return jnp.where(x > 0, x, slope * x)


def _round_up(x, m):
    return ((x + m - 1) // m) * m


def dssm_kernel(x_ref, w1_ref, b1_ref, w2_ref, b2_ref, w3_ref, b3_ref, o_ref):
    # x arrives as f32 straight from HBM; cast to bf16 here (VPU, hidden under DMA)
    x = x_ref[...].astype(w1_ref.dtype)

    # linear1 (bf16 MXU, f32 accumulate) + f32 bias + LeakyReLU
    h = jnp.dot(x, w1_ref[...], preferred_element_type=jnp.float32)
    h = _leaky_relu(h + b1_ref[...])

    # linear2
    h = jnp.dot(h.astype(w2_ref.dtype), w2_ref[...],
                preferred_element_type=jnp.float32)
    h = _leaky_relu(h + b2_ref[...])

    # linear3 (no activation in forward())
    h = jnp.dot(h.astype(w3_ref.dtype), w3_ref[...],
                preferred_element_type=jnp.float32)
    o_ref[...] = (h + b3_ref[...]).astype(o_ref.dtype)


def bert_dssm_forward(x, params, *, tm=4096, max_fold=8,
                      compute_dtype=jnp.bfloat16):
    """x: [batch, nsize] float32. params: dict (w1,b1,w2,b2,w3,b3); weights
    stored as [in, out], biases as [1, out]."""
    w1, b1 = params["w1"], params["b1"]
    w2, b2 = params["w2"], params["b2"]
    w3, b3 = params["w3"], params["b3"]

    batch, nsize = x.shape
    hidden = w1.shape[1]
    outf = w3.shape[1]
    out_dtype = x.dtype
    itemsize_c = jnp.dtype(compute_dtype).itemsize

    # ---- choose the batch-fold factor (lane densification) ---------------
    # fold rows are packed along lanes; weights become block-diagonal (fold^2
    # larger).  Only worth it while the folded weights stay tiny for VMEM.
    weight_elems = nsize * hidden + hidden * hidden + hidden * outf
    fold = max(1, int(max_fold))
    while fold > 1 and fold * fold * weight_elems * itemsize_c > (8 << 20):
        fold //= 2

    nsize_f, hidden_f, outf_f = fold * nsize, fold * hidden, fold * outf

    # Exact block-diagonal expansion (kron with a 0/1 identity is exact in bf16).
    eye = jnp.eye(fold, dtype=compute_dtype)
    w1f = jnp.kron(eye, w1.astype(compute_dtype))   # [fold*nsize , fold*hidden]
    w2f = jnp.kron(eye, w2.astype(compute_dtype))   # [fold*hidden, fold*hidden]
    w3f = jnp.kron(eye, w3.astype(compute_dtype))   # [fold*hidden, fold*outf ]
    b1f = jnp.tile(b1.astype(jnp.float32), (1, fold))
    b2f = jnp.tile(b2.astype(jnp.float32), (1, fold))
    b3f = jnp.tile(b3.astype(jnp.float32), (1, fold))

    # ---- batch tiling over *folded* rows ----------------------------------
    rows_f = -(-batch // fold)                         # folded rows needed
    tmf_req = max(8, min(max(tm // fold, 8) // 8 * 8, 4096))
    n_steps = -(-rows_f // tmf_req)
    if rows_f >= 16:
        n_steps = max(n_steps, 2)      # keep both v7x TensorCores busy
    tmf = _round_up(-(-rows_f // n_steps), 8)          # tile: multiple of 8
    rows_p = n_steps * tmf                             # padded folded rows
    padded = rows_p * fold                             # padded original rows

    xp = x if padded == batch else jnp.pad(x, ((0, padded - batch), (0, 0)))
    xf = xp.reshape(rows_p, nsize_f)   # contiguous row-major reshape: free

    flops = 2 * rows_p * (nsize_f * hidden_f + hidden_f * hidden_f
                          + hidden_f * outf_f)
    bytes_accessed = (
        rows_p * nsize_f * 4                                   # x (f32 in)
        + (nsize_f * hidden_f + hidden_f * hidden_f
           + hidden_f * outf_f) * itemsize_c                   # weights (bf16)
        + (2 * hidden_f + outf_f) * 4                          # biases (f32)
        + rows_p * outf_f * 4                                  # out (f32)
    )

    out_f = pl.pallas_call(
        dssm_kernel,
        out_shape=jax.ShapeDtypeStruct((rows_p, outf_f), out_dtype),
        grid=(n_steps,),
        in_specs=[
            pl.BlockSpec((tmf, nsize_f), lambda i: (i, 0)),        # x (streamed)
            pl.BlockSpec((nsize_f, hidden_f), lambda i: (0, 0)),   # w1 (resident)
            pl.BlockSpec((1, hidden_f), lambda i: (0, 0)),         # b1
            pl.BlockSpec((hidden_f, hidden_f), lambda i: (0, 0)),  # w2
            pl.BlockSpec((1, hidden_f), lambda i: (0, 0)),         # b2
            pl.BlockSpec((hidden_f, outf_f), lambda i: (0, 0)),    # w3
            pl.BlockSpec((1, outf_f), lambda i: (0, 0)),           # b3
        ],
        out_specs=pl.BlockSpec((tmf, outf_f), lambda i: (i, 0)),
        compiler_params=pltpu.CompilerParams(
            dimension_semantics=("parallel",)),
        cost_estimate=pl.CostEstimate(flops=flops, transcendentals=0,
                                      bytes_accessed=bytes_accessed),
    )(xf, w1f, b1f, w2f, b2f, w3f, b3f)

    # Unfold (free reshape) and drop padded rows.
    return out_f.reshape(padded, outf)[:batch]


# ---------------------------------------------------------------------------
# Init + references (for the self-test).
# ---------------------------------------------------------------------------
def xavier_uniform(key, fan_out, fan_in, dtype=jnp.float32):
    # matches torch.nn.init.xavier_uniform_ on an (out, in) weight
    limit = (6.0 / (fan_in + fan_out)) ** 0.5
    return jax.random.uniform(key, (fan_out, fan_in), dtype,
                              minval=-limit, maxval=limit)


def init_params(key, nsize, hiddensize, outfeatures, dtype=jnp.float32):
    k1, k2, k3, k4, k5, k6 = jax.random.split(key, 6)
    # weights stored transposed ([in, out]) for the kernel; biases 2D [1, out]
    w1 = xavier_uniform(k1, hiddensize, nsize, dtype).T
    w2 = xavier_uniform(k2, hiddensize, hiddensize, dtype).T
    w3 = xavier_uniform(k3, outfeatures, hiddensize, dtype).T
    # PyTorch default bias init: U(-1/sqrt(fan_in), 1/sqrt(fan_in))
    b1 = jax.random.uniform(k4, (1, hiddensize), dtype,
                            minval=-1.0 / nsize ** 0.5, maxval=1.0 / nsize ** 0.5)
    b2 = jax.random.uniform(k5, (1, hiddensize), dtype,
                            minval=-1.0 / hiddensize ** 0.5, maxval=1.0 / hiddensize ** 0.5)
    b3 = jax.random.uniform(k6, (1, outfeatures), dtype,
                            minval=-1.0 / hiddensize ** 0.5, maxval=1.0 / hiddensize ** 0.5)
    return {"w1": w1, "b1": b1, "w2": w2, "b2": b2, "w3": w3, "b3": b3}


def reference_forward_f32(x, params):
    h = _leaky_relu(x @ params["w1"] + params["b1"])
    h = _leaky_relu(h @ params["w2"] + params["b2"])
    return h @ params["w3"] + params["b3"]


def reference_forward_bf16(x, params):
    # Same bf16-operand / f32-accumulate recipe as the kernel.
    bf = jnp.bfloat16
    h = jnp.dot(x.astype(bf), params["w1"].astype(bf),
                preferred_element_type=jnp.float32) + params["b1"]
    h = _leaky_relu(h)
    h = jnp.dot(h.astype(bf), params["w2"].astype(bf),
                preferred_element_type=jnp.float32) + params["b2"]
    h = _leaky_relu(h)
    h = jnp.dot(h.astype(bf), params["w3"].astype(bf),
                preferred_element_type=jnp.float32) + params["b3"]
    return h


if __name__ == "__main__":
    # module args: nsize=32, hiddensize=64, outfeatures=16; batch=8
    nsize, hiddensize, outfeatures, batch = 32, 64, 16, 8

    key = jax.random.PRNGKey(0)
    kx, kp = jax.random.split(key)
    x = jax.random.normal(kx, (batch, nsize), jnp.float32)
    params = init_params(kp, nsize, hiddensize, outfeatures)

    out = jax.block_until_ready(bert_dssm_forward(x, params))
    ref_bf16 = reference_forward_bf16(x, params)
    ref_f32 = reference_forward_f32(x, params)
    assert out.shape == (batch, outfeatures)
    assert jnp.allclose(out, ref_bf16, atol=5e-3, rtol=5e-3)
    assert jnp.allclose(out, ref_f32, atol=3e-2, rtol=3e-2)

    # Exercise the multi-step grid / padded path (batch not a multiple of the tile).
    kx2 = jax.random.fold_in(kx, 1)
    x2 = jax.random.normal(kx2, (300, nsize), jnp.float32)
    out2 = jax.block_until_ready(bert_dssm_forward(x2, params, tm=128))
    ref2 = reference_forward_bf16(x2, params)
    assert out2.shape == (300, outfeatures)
    assert jnp.allclose(out2, ref2, atol=5e-3, rtol=5e-3)
    assert jnp.allclose(out2, reference_forward_f32(x2, params), atol=3e-2, rtol=3e-2)

    print("KERNEL_OK")
</pallas_src>

<mosaic_0001>
module attributes {stable_mosaic.version = 11 : i64} {
  func.func @dssm_kernel(%arg0: i32, %arg1: memref<8x256xf32, #tpu.memory_space<vmem>>, %arg2: memref<256x512xbf16, #tpu.memory_space<vmem>>, %arg3: memref<1x512xf32, #tpu.memory_space<vmem>>, %arg4: memref<512x512xbf16, #tpu.memory_space<vmem>>, %arg5: memref<1x512xf32, #tpu.memory_space<vmem>>, %arg6: memref<512x128xbf16, #tpu.memory_space<vmem>>, %arg7: memref<1x128xf32, #tpu.memory_space<vmem>>, %arg8: memref<8x128xf32, #tpu.memory_space<vmem>>) attributes {dimension_semantics = [#tpu.dimension_semantics<parallel>], iteration_bounds = array<i64: 1>, scalar_prefetch = 0 : i64, scratch_operands = 0 : i64, tpu.core_type = #tpu.core_type<tc>, window_params = [{transform_indices = @transform_0, window_bounds = array<i64: 8, 256>}, {pipeline_mode = #tpu.pipeline_mode<synchronous>, transform_indices = @transform_1, window_bounds = array<i64: 256, 512>}, {pipeline_mode = #tpu.pipeline_mode<synchronous>, transform_indices = @transform_2, window_bounds = array<i64: 1, 512>}, {pipeline_mode = #tpu.pipeline_mode<synchronous>, transform_indices = @transform_3, window_bounds = array<i64: 512, 512>}, {pipeline_mode = #tpu.pipeline_mode<synchronous>, transform_indices = @transform_4, window_bounds = array<i64: 1, 512>}, {pipeline_mode = #tpu.pipeline_mode<synchronous>, transform_indices = @transform_5, window_bounds = array<i64: 512, 128>}, {pipeline_mode = #tpu.pipeline_mode<synchronous>, transform_indices = @transform_6, window_bounds = array<i64: 1, 128>}, {transform_indices = @transform_7, window_bounds = array<i64: 8, 128>}]} {
    %c0 = arith.constant 0 : index
    %c0_0 = arith.constant 0 : index
    %0 = vector.load %arg1[%c0, %c0_0] : memref<8x256xf32, #tpu.memory_space<vmem>>, vector<8x256xf32>
    %1 = arith.truncf %0 : vector<8x256xf32> to vector<8x256xbf16>
    %c0_1 = arith.constant 0 : index
    %c0_2 = arith.constant 0 : index
    %2 = vector.load %arg2[%c0_1, %c0_2] : memref<256x512xbf16, #tpu.memory_space<vmem>>, vector<256x512xbf16>
    %cst = arith.constant dense<0.000000e+00> : vector<8x512xf32>
    %3 = tpu.matmul %1, %2, %cst {dimension_numbers = #tpu.dot_dimension_numbers<[1], [0], [0], [1], [0, 0, 1, 1], [], []>} : vector<8x256xbf16>, vector<256x512xbf16>, vector<8x512xf32> -> vector<8x512xf32>
    %c0_3 = arith.constant 0 : index
    %c0_4 = arith.constant 0 : index
    %4 = vector.load %arg3[%c0_3, %c0_4] : memref<1x512xf32, #tpu.memory_space<vmem>>, vector<1x512xf32>
    %5 = vector.broadcast %4 : vector<1x512xf32> to vector<8x512xf32>
    %6 = arith.addf %3, %5 : vector<8x512xf32>
    %cst_5 = arith.constant 0.000000e+00 : f32
    %7 = vector.broadcast %cst_5 : f32 to vector<8x512xf32>
    %8 = arith.cmpf ogt, %6, %7 : vector<8x512xf32>
    %cst_6 = arith.constant 1.000000e-03 : f32
    %9 = vector.broadcast %cst_6 : f32 to vector<8x512xf32>
    %10 = arith.mulf %9, %6 : vector<8x512xf32>
    %11 = arith.select %8, %6, %10 : vector<8x512xi1>, vector<8x512xf32>
    %12 = arith.truncf %11 : vector<8x512xf32> to vector<8x512xbf16>
    %c0_7 = arith.constant 0 : index
    %c0_8 = arith.constant 0 : index
    %13 = vector.load %arg4[%c0_7, %c0_8] : memref<512x512xbf16, #tpu.memory_space<vmem>>, vector<512x512xbf16>
    %cst_9 = arith.constant dense<0.000000e+00> : vector<8x512xf32>
    %14 = tpu.matmul %12, %13, %cst_9 {dimension_numbers = #tpu.dot_dimension_numbers<[1], [0], [0], [1], [0, 0, 1, 1], [], []>} : vector<8x512xbf16>, vector<512x512xbf16>, vector<8x512xf32> -> vector<8x512xf32>
    %c0_10 = arith.constant 0 : index
    %c0_11 = arith.constant 0 : index
    %15 = vector.load %arg5[%c0_10, %c0_11] : memref<1x512xf32, #tpu.memory_space<vmem>>, vector<1x512xf32>
    %16 = vector.broadcast %15 : vector<1x512xf32> to vector<8x512xf32>
    %17 = arith.addf %14, %16 : vector<8x512xf32>
    %cst_12 = arith.constant 0.000000e+00 : f32
    %18 = vector.broadcast %cst_12 : f32 to vector<8x512xf32>
    %19 = arith.cmpf ogt, %17, %18 : vector<8x512xf32>
    %cst_13 = arith.constant 1.000000e-03 : f32
    %20 = vector.broadcast %cst_13 : f32 to vector<8x512xf32>
    %21 = arith.mulf %20, %17 : vector<8x512xf32>
    %22 = arith.select %19, %17, %21 : vector<8x512xi1>, vector<8x512xf32>
    %23 = arith.truncf %22 : vector<8x512xf32> to vector<8x512xbf16>
    %c0_14 = arith.constant 0 : index
    %c0_15 = arith.constant 0 : index
    %24 = vector.load %arg6[%c0_14, %c0_15] : memref<512x128xbf16, #tpu.memory_space<vmem>>, vector<512x128xbf16>
    %cst_16 = arith.constant dense<0.000000e+00> : vector<8x128xf32>
    %25 = tpu.matmul %23, %24, %cst_16 {dimension_numbers = #tpu.dot_dimension_numbers<[1], [0], [0], [1], [0, 0, 1, 1], [], []>} : vector<8x512xbf16>, vector<512x128xbf16>, vector<8x128xf32> -> vector<8x128xf32>
    %c0_17 = arith.constant 0 : index
    %c0_18 = arith.constant 0 : index
    %26 = vector.load %arg7[%c0_17, %c0_18] : memref<1x128xf32, #tpu.memory_space<vmem>>, vector<1x128xf32>
    %27 = vector.broadcast %26 : vector<1x128xf32> to vector<8x128xf32>
    %28 = arith.addf %25, %27 : vector<8x128xf32>
    %c0_19 = arith.constant 0 : index
    %c0_20 = arith.constant 0 : index
    %29 = vector.load %arg8[%c0_19, %c0_20] : memref<8x128xf32, #tpu.memory_space<vmem>>, vector<8x128xf32>
    tpu.vector_store %arg8[%c0_19, %c0_20], %28 {strides = array<i32>} : memref<8x128xf32, #tpu.memory_space<vmem>>, vector<8x128xf32>,
    return
  }
  func.func @transform_0(%arg0: i32) -> (i32, i32) {
    %c0_i32 = arith.constant 0 : i32
    %c0_i32_0 = arith.constant 0 : i32
    return %arg0, %c0_i32 : i32, i32
  }
  func.func @transform_1(%arg0: i32) -> (i32, i32) {
    %c0_i32 = arith.constant 0 : i32
    %c0_i32_0 = arith.constant 0 : i32
    %c0_i32_1 = arith.constant 0 : i32
    return %c0_i32, %c0_i32_0 : i32, i32
  }
  func.func @transform_2(%arg0: i32) -> (i32, i32) {
    %c0_i32 = arith.constant 0 : i32
    %c0_i32_0 = arith.constant 0 : i32
    %c0_i32_1 = arith.constant 0 : i32
    return %c0_i32, %c0_i32_0 : i32, i32
  }
  func.func @transform_3(%arg0: i32) -> (i32, i32) {
    %c0_i32 = arith.constant 0 : i32
    %c0_i32_0 = arith.constant 0 : i32
    %c0_i32_1 = arith.constant 0 : i32
    return %c0_i32, %c0_i32_0 : i32, i32
  }
  func.func @transform_4(%arg0: i32) -> (i32, i32) {
    %c0_i32 = arith.constant 0 : i32
    %c0_i32_0 = arith.constant 0 : i32
    %c0_i32_1 = arith.constant 0 : i32
    return %c0_i32, %c0_i32_0 : i32, i32
  }
  func.func @transform_5(%arg0: i32) -> (i32, i32) {
    %c0_i32 = arith.constant 0 : i32
    %c0_i32_0 = arith.constant 0 : i32
    %c0_i32_1 = arith.constant 0 : i32
    return %c0_i32, %c0_i32_0 : i32, i32
  }
  func.func @transform_6(%arg0: i32) -> (i32, i32) {
    %c0_i32 = arith.constant 0 : i32
    %c0_i32_0 = arith.constant 0 : i32
    %c0_i32_1 = arith.constant 0 : i32
    return %c0_i32, %c0_i32_0 : i32, i32
  }
  func.func @transform_7(%arg0: i32) -> (i32, i32) {
    %c0_i32 = arith.constant 0 : i32
    %c0_i32_0 = arith.constant 0 : i32
    return %arg0, %c0_i32 : i32, i32
  }
}

</mosaic_0001>

<llo_original>
// kernel: tpu_custom_call.1
$region0: #{tpu_custom_call.1}
  #allocation0 [shape = 'u32[]', space=smem, size = 0x4, offset = 0x4, fixed_abs, tag = 'smem constant byte address 0x4 - core index']
  #allocation1 [shape = 'u32[144,128]{1,0:T(1,128)}', space=vmem, size = 0x12000, scoped, tag = 'internal scratch']
  %s0 = inlined_call_operand.hbm [shape: f32[8,256], index: 0, kind: input, shape index: {}]
  %s1 = inlined_call_operand.hbm [shape: bf16[256,512], index: 1, kind: input, shape index: {}]
  %s2 = inlined_call_operand.hbm [shape: f32[1,512], index: 2, kind: input, shape index: {}]
  %s3 = inlined_call_operand.hbm [shape: bf16[512,512], index: 3, kind: input, shape index: {}]
  %s4 = inlined_call_operand.vmem [shape: f32[1,512], index: 4, kind: input, shape index: {}]
  %s5 = inlined_call_operand.hbm [shape: bf16[512,128], index: 5, kind: input, shape index: {}]
  %s6 = inlined_call_operand.vmem [shape: f32[1,128], index: 6, kind: input, shape index: {}]
  %s7 = inlined_call_operand.hbm [shape: f32[8,128], index: 7, kind: output, shape index: {}]
  %s8 = sld [smem:[#allocation0]]
  $region58: #{tpu_custom_call.1} parent=0
    _
  %s10 = ssub.s32 1, %s8
  %s11 = scalar_select 0, %s10, %s8
  $region1: #{tpu_custom_call.1} parent=0
    #allocation2 [shape = 'u8[8192]{0}', space=vmem, size = 0x2000, scoped, tag = 'input window, operand 0, single buffered']
    #allocation3 [shape = 's32[1]{0}', space=sflag, size = 0x4, scoped, tag = 'scoped memory for tpu_custom_call.1']
    #allocation4 [shape = 's32[1]{0}', space=sflag, size = 0x4, scoped, tag = 'scoped memory for tpu_custom_call.1']
    #allocation5 [shape = 'u8[262144]{0}', space=vmem, size = 0x40000, scoped, tag = 'input window, operand 1, single buffered']
    #allocation6 [shape = 's32[1]{0}', space=sflag, size = 0x4, scoped, tag = 'scoped memory for tpu_custom_call.1']
    #allocation7 [shape = 'u8[2048]{0}', space=vmem, size = 0x800, scoped, tag = 'input window, operand 2, single buffered']
    #allocation8 [shape = 'u8[524288]{0}', space=vmem, size = 0x80000, scoped, tag = 'input window, operand 3, single buffered']
    #allocation9 [shape = 's32[1]{0}', space=sflag, size = 0x4, scoped, tag = 'scoped memory for tpu_custom_call.1']
    #allocation10 [shape = 'u8[131072]{0}', space=vmem, size = 0x20000, scoped, tag = 'input window, operand 5, single buffered']
    #allocation11 [shape = 'u8[4096]{0}', space=vmem, size = 0x1000, scoped, tag = 'output window, operand 0, single buffered']
    %12 = vsyncpa [#allocation3], 0
    %13 = vsyncpa [#allocation6], 0
    %14 = vsyncpa [#allocation9], 0
    %15 = vsyncpa [#allocation4], 0
    // Predicated region
    $region2: #{tpu_custom_call.1} parent=1 // pred_check
      _
    $region3: #{tpu_custom_call.1} parent=1 // pred_check_branch
      %17 = sbr.rel (0) target = $region5
    $region4: #{tpu_custom_call.1} parent=1 // pred_region
      %s19 = ssub.s32 256, 256
      %20 = vsyncadd [#allocation3], %s19
      %s22 = sshll.u32 [#allocation2], 4
      %s23 = int_to_ptr.vmem [resolvable:$true] %s22
      %25 = dma.hbm_to_vmem [thread:$0]  %s0, 256, %s23, [#allocation3]
    $region5: #{tpu_custom_call.1} parent=1 // pred_fallthru
      _
    // Predicated region
    $region6: #{tpu_custom_call.1} parent=1 // pred_check
      _
    $region7: #{tpu_custom_call.1} parent=1 // pred_check_branch
      %27 = sbr.rel (0) target = $region9
    $region8: #{tpu_custom_call.1} parent=1 // pred_region
      %s29 = ssub.s32 8192, 8192
      %30 = vsyncadd [#allocation6], %s29
      %s31 = sshll.u32 [#allocation5], 4
      %s32 = int_to_ptr.vmem [resolvable:$true] %s31
      %37 = dma.hbm_to_vmem [thread:$0]  %s1, 8192, %s32, [#allocation6], 256, 256, 16
    $region9: #{tpu_custom_call.1} parent=1 // pred_fallthru
      _
    // Predicated region
    $region10: #{tpu_custom_call.1} parent=1 // pred_check
      _
    $region11: #{tpu_custom_call.1} parent=1 // pred_check_branch
      %39 = sbr.rel (0) target = $region13
    $region12: #{tpu_custom_call.1} parent=1 // pred_region
      %s41 = ssub.s32 64, 64
      %42 = vsyncadd [#allocation6], %s41
      %s44 = sshll.u32 [#allocation7], 4
      %s45 = int_to_ptr.vmem [resolvable:$true] %s44
      %47 = dma.hbm_to_vmem [thread:$0]  %s2, 64, %s45, [#allocation6]
    $region13: #{tpu_custom_call.1} parent=1 // pred_fallthru
      _
    // Predicated region
    $region14: #{tpu_custom_call.1} parent=1 // pred_check
      _
    $region15: #{tpu_custom_call.1} parent=1 // pred_check_branch
      %49 = sbr.rel (0) target = $region17
    $region16: #{tpu_custom_call.1} parent=1 // pred_region
      %s51 = ssub.s32 16384, 16384
      %52 = vsyncadd [#allocation9], %s51
      %s53 = sshll.u32 [#allocation8], 4
      %s54 = int_to_ptr.vmem [resolvable:$true] %s53
      %59 = dma.hbm_to_vmem [thread:$0]  %s3, 16384, %s54, [#allocation9], 256, 256, 16
    $region17: #{tpu_custom_call.1} parent=1 // pred_fallthru
      _
    // Predicated region
    $region18: #{tpu_custom_call.1} parent=1 // pred_check
      _
    $region19: #{tpu_custom_call.1} parent=1 // pred_check_branch
      %61 = sbr.rel (0) target = $region21
    $region20: #{tpu_custom_call.1} parent=1 // pred_region
      _
    $region21: #{tpu_custom_call.1} parent=1 // pred_fallthru
      _
    // Predicated region
    $region22: #{tpu_custom_call.1} parent=1 // pred_check
      _
    $region23: #{tpu_custom_call.1} parent=1 // pred_check_branch
      %63 = sbr.rel (0) target = $region25
    $region24: #{tpu_custom_call.1} parent=1 // pred_region
      %s65 = ssub.s32 4096, 4096
      %66 = vsyncadd [#allocation9], %s65
      %s67 = sshll.u32 [#allocation10], 4
      %s68 = int_to_ptr.vmem [resolvable:$true] %s67
      %73 = dma.hbm_to_vmem [thread:$0]  %s5, 4096, %s68, [#allocation9], 64, 64, 4
    $region25: #{tpu_custom_call.1} parent=1 // pred_fallthru
      _
    // Predicated region
    $region26: #{tpu_custom_call.1} parent=1 // pred_check
      _
    $region27: #{tpu_custom_call.1} parent=1 // pred_check_branch
      %75 = sbr.rel (0) target = $region29
    $region28: #{tpu_custom_call.1} parent=1 // pred_region
      _
    $region29: #{tpu_custom_call.1} parent=1 // pred_fallthru
      _
    // Predicated region
    $region30: #{tpu_custom_call.1} parent=1 // pred_check
      _
    $region31: #{tpu_custom_call.1} parent=1 // pred_check_branch
      %77 = sbr.rel (0) target = $region33
    $region32: #{tpu_custom_call.1} parent=1 // pred_region
      %78 = dma.done [#allocation3], 256
    $region33: #{tpu_custom_call.1} parent=1 // pred_fallthru
      _
    // Predicated region
    $region34: #{tpu_custom_call.1} parent=1 // pred_check
      _
    $region35: #{tpu_custom_call.1} parent=1 // pred_check_branch
      %80 = sbr.rel (0) target = $region37
    $region36: #{tpu_custom_call.1} parent=1 // pred_region
      %81 = dma.done [#allocation6], 8192
    $region37: #{tpu_custom_call.1} parent=1 // pred_fallthru
      _
    // Predicated region
    $region38: #{tpu_custom_call.1} parent=1 // pred_check
      _
    $region39: #{tpu_custom_call.1} parent=1 // pred_check_branch
      %83 = sbr.rel (0) target = $region41
    $region40: #{tpu_custom_call.1} parent=1 // pred_region
      %84 = dma.done [#allocation6], 64
    $region41: #{tpu_custom_call.1} parent=1 // pred_fallthru
      _
    // Predicated region
    $region42: #{tpu_custom_call.1} parent=1 // pred_check
      _
    $region43: #{tpu_custom_call.1} parent=1 // pred_check_branch
      %86 = sbr.rel (0) target = $region45
    $region44: #{tpu_custom_call.1} parent=1 // pred_region
      %87 = dma.done [#allocation9], 16384
    $region45: #{tpu_custom_call.1} parent=1 // pred_fallthru
      _
    // Predicated region
    $region46: #{tpu_custom_call.1} parent=1 // pred_check
      _
    $region47: #{tpu_custom_call.1} parent=1 // pred_check_branch
      %89 = sbr.rel (0) target = $region49
    $region48: #{tpu_custom_call.1} parent=1 // pred_region
      %90 = dma.done [#allocation9], 4096
    $region49: #{tpu_custom_call.1} parent=1 // pred_fallthru
      _
    %v92 = vld [vmem:[#allocation2] sm:$0xff]
    %v93 = vld [vmem:[#allocation2 + $0x8] sm:$0xff]
    %v94 = vpack.c.bf16 %v92, %v92
    %v95 = vpack.c.bf16 %v93, %v93
    %v96 = vld [vmem:[#allocation5] sm:$0xff]
    %v97 = vld [vmem:[#allocation5 + $0x8] sm:$0xff]
    %v98 = vld [vmem:[#allocation5 + $0x10] sm:$0xff]
    %v99 = vld [vmem:[#allocation5 + $0x18] sm:$0xff]
    %v100 = vld [vmem:[#allocation5 + $0x20] sm:$0xff]
    %v101 = vld [vmem:[#allocation5 + $0x28] sm:$0xff]
    %v102 = vld [vmem:[#allocation5 + $0x30] sm:$0xff]
    %v103 = vld [vmem:[#allocation5 + $0x38] sm:$0xff]
    %v104 = vld [vmem:[#allocation5 + $0x40] sm:$0xff]
    %v105 = vld [vmem:[#allocation5 + $0x48] sm:$0xff]
    %v106 = vld [vmem:[#allocation5 + $0x50] sm:$0xff]
    %v107 = vld [vmem:[#allocation5 + $0x58] sm:$0xff]
    %v108 = vld [vmem:[#allocation5 + $0x60] sm:$0xff]
    %v109 = vld [vmem:[#allocation5 + $0x68] sm:$0xff]
    %v110 = vld [vmem:[#allocation5 + $0x70] sm:$0xff]
    %v111 = vld [vmem:[#allocation5 + $0x78] sm:$0xff]
    %v112 = vld [vmem:[#allocation5 + $0x80] sm:$0xff]
    %v113 = vld [vmem:[#allocation5 + $0x88] sm:$0xff]
    %v114 = vld [vmem:[#allocation5 + $0x90] sm:$0xff]
    %v115 = vld [vmem:[#allocation5 + $0x98] sm:$0xff]
    %v116 = vld [vmem:[#allocation5 + $0xa0] sm:$0xff]
    %v117 = vld [vmem:[#allocation5 + $0xa8] sm:$0xff]
    %v118 = vld [vmem:[#allocation5 + $0xb0] sm:$0xff]
    %v119 = vld [vmem:[#allocation5 + $0xb8] sm:$0xff]
    %v120 = vld [vmem:[#allocation5 + $0xc0] sm:$0xff]
    %v121 = vld [vmem:[#allocation5 + $0xc8] sm:$0xff]
    %v122 = vld [vmem:[#allocation5 + $0xd0] sm:$0xff]
    %v123 = vld [vmem:[#allocation5 + $0xd8] sm:$0xff]
    %v124 = vld [vmem:[#allocation5 + $0xe0] sm:$0xff]
    %v125 = vld [vmem:[#allocation5 + $0xe8] sm:$0xff]
    %v126 = vld [vmem:[#allocation5 + $0xf0] sm:$0xff]
    %v127 = vld [vmem:[#allocation5 + $0xf8] sm:$0xff]
    %v128 = vld [vmem:[#allocation5 + $0x100] sm:$0xff]
    %v129 = vld [vmem:[#allocation5 + $0x108] sm:$0xff]
    %v130 = vld [vmem:[#allocation5 + $0x110] sm:$0xff]
    %v131 = vld [vmem:[#allocation5 + $0x118] sm:$0xff]
    %v132 = vld [vmem:[#allocation5 + $0x120] sm:$0xff]
    %v133 = vld [vmem:[#allocation5 + $0x128] sm:$0xff]
    %v134 = vld [vmem:[#allocation5 + $0x130] sm:$0xff]
    %v135 = vld [vmem:[#allocation5 + $0x138] sm:$0xff]
    %v136 = vld [vmem:[#allocation5 + $0x140] sm:$0xff]
    %v137 = vld [vmem:[#allocation5 + $0x148] sm:$0xff]
    %v138 = vld [vmem:[#allocation5 + $0x150] sm:$0xff]
    %v139 = vld [vmem:[#allocation5 + $0x158] sm:$0xff]
    %v140 = vld [vmem:[#allocation5 + $0x160] sm:$0xff]
    %v141 = vld [vmem:[#allocation5 + $0x168] sm:$0xff]
    %v142 = vld [vmem:[#allocation5 + $0x170] sm:$0xff]
    %v143 = vld [vmem:[#allocation5 + $0x178] sm:$0xff]
    %v144 = vld [vmem:[#allocation5 + $0x180] sm:$0xff]
    %v145 = vld [vmem:[#allocation5 + $0x188] sm:$0xff]
    %v146 = vld [vmem:[#allocation5 + $0x190] sm:$0xff]
    %v147 = vld [vmem:[#allocation5 + $0x198] sm:$0xff]
    %v148 = vld [vmem:[#allocation5 + $0x1a0] sm:$0xff]
    %v149 = vld [vmem:[#allocation5 + $0x1a8] sm:$0xff]
    %v150 = vld [vmem:[#allocation5 + $0x1b0] sm:$0xff]
    %v151 = vld [vmem:[#allocation5 + $0x1b8] sm:$0xff]
    %v152 = vld [vmem:[#allocation5 + $0x1c0] sm:$0xff]
    %v153 = vld [vmem:[#allocation5 + $0x1c8] sm:$0xff]
    %v154 = vld [vmem:[#allocation5 + $0x1d0] sm:$0xff]
    %v155 = vld [vmem:[#allocation5 + $0x1d8] sm:$0xff]
    %v156 = vld [vmem:[#allocation5 + $0x1e0] sm:$0xff]
    %v157 = vld [vmem:[#allocation5 + $0x1e8] sm:$0xff]
    %v158 = vld [vmem:[#allocation5 + $0x1f0] sm:$0xff]
    %v159 = vld [vmem:[#allocation5 + $0x1f8] sm:$0xff]
    %v160 = vld [vmem:[#allocation7] sm:$0xf]
    %v162 = vlaneseq
    %v163 = vshrl.u32 %v162, 7
    %v164 = vsub.s32 0, %v163
    %v165 = vrot.slane %v160, %v164
    %v166 = vlaneseq
    %v167 = vshrl.u32 %v166, 7
    %v168 = vsub.s32 1, %v167
    %v169 = vrot.slane %v160, %v168
    %v170 = vlaneseq
    %v171 = vshrl.u32 %v170, 7
    %v172 = vsub.s32 2, %v171
    %v173 = vrot.slane %v160, %v172
    %v174 = vlaneseq
    %v175 = vshrl.u32 %v174, 7
    %v176 = vsub.s32 3, %v175
    %v177 = vrot.slane %v160, %v176
    %v246 = vunpack.c.l.b16 %v96
    %v247 = vunpack.c.h.b16 %v96
    %v248 = vunpack.c.l.b16 %v97
    %v249 = vunpack.c.h.b16 %v97
    %v250 = vunpack.c.l.b16 %v98
    %v251 = vunpack.c.h.b16 %v98
    %v252 = vunpack.c.l.b16 %v99
    %v253 = vunpack.c.h.b16 %v99
    %v254 = vunpack.c.l.b16 %v100
    %v255 = vunpack.c.h.b16 %v100
    %v256 = vunpack.c.l.b16 %v101
    %v257 = vunpack.c.h.b16 %v101
    %v258 = vunpack.c.l.b16 %v102
    %v259 = vunpack.c.h.b16 %v102
    %v260 = vunpack.c.l.b16 %v103
    %v261 = vunpack.c.h.b16 %v103
    %v262 = vunpack.c.l.b16 %v104
    %v263 = vunpack.c.h.b16 %v104
    %v264 = vunpack.c.l.b16 %v105
    %v265 = vunpack.c.h.b16 %v105
    %v266 = vunpack.c.l.b16 %v106
    %v267 = vunpack.c.h.b16 %v106
    %v268 = vunpack.c.l.b16 %v107
    %v269 = vunpack.c.h.b16 %v107
    %v270 = vunpack.c.l.b16 %v108
    %v271 = vunpack.c.h.b16 %v108
    %v272 = vunpack.c.l.b16 %v109
    %v273 = vunpack.c.h.b16 %v109
    %v274 = vunpack.c.l.b16 %v110
    %v275 = vunpack.c.h.b16 %v110
    %v276 = vunpack.c.l.b16 %v111
    %v277 = vunpack.c.h.b16 %v111
    %v278 = vunpack.c.l.b16 %v112
    %v279 = vunpack.c.h.b16 %v112
    %v280 = vunpack.c.l.b16 %v113
    %v281 = vunpack.c.h.b16 %v113
    %v282 = vunpack.c.l.b16 %v114
    %v283 = vunpack.c.h.b16 %v114
    %v284 = vunpack.c.l.b16 %v115
    %v285 = vunpack.c.h.b16 %v115
    %v286 = vunpack.c.l.b16 %v116
    %v287 = vunpack.c.h.b16 %v116
    %v288 = vunpack.c.l.b16 %v117
    %v289 = vunpack.c.h.b16 %v117
    %v290 = vunpack.c.l.b16 %v118
    %v291 = vunpack.c.h.b16 %v118
    %v292 = vunpack.c.l.b16 %v119
    %v293 = vunpack.c.h.b16 %v119
    %v294 = vunpack.c.l.b16 %v120
    %v295 = vunpack.c.h.b16 %v120
    %v296 = vunpack.c.l.b16 %v121
    %v297 = vunpack.c.h.b16 %v121
    %v298 = vunpack.c.l.b16 %v122
    %v299 = vunpack.c.h.b16 %v122
    %v300 = vunpack.c.l.b16 %v123
    %v301 = vunpack.c.h.b16 %v123
    %v302 = vunpack.c.l.b16 %v124
    %v303 = vunpack.c.h.b16 %v124
    %v304 = vunpack.c.l.b16 %v125
    %v305 = vunpack.c.h.b16 %v125
    %v306 = vunpack.c.l.b16 %v126
    %v307 = vunpack.c.h.b16 %v126
    %v308 = vunpack.c.l.b16 %v127
    %v309 = vunpack.c.h.b16 %v127
    %v310 = vunpack.c.l.b16 %v128
    %v311 = vunpack.c.h.b16 %v128
    %v312 = vunpack.c.l.b16 %v129
    %v313 = vunpack.c.h.b16 %v129
    %v314 = vunpack.c.l.b16 %v130
    %v315 = vunpack.c.h.b16 %v130
    %v316 = vunpack.c.l.b16 %v131
    %v317 = vunpack.c.h.b16 %v131
    %v318 = vunpack.c.l.b16 %v132
    %v319 = vunpack.c.h.b16 %v132
    %v320 = vunpack.c.l.b16 %v133
    %v321 = vunpack.c.h.b16 %v133
    %v322 = vunpack.c.l.b16 %v134
    %v323 = vunpack.c.h.b16 %v134
    %v324 = vunpack.c.l.b16 %v135
    %v325 = vunpack.c.h.b16 %v135
    %v326 = vunpack.c.l.b16 %v136
    %v327 = vunpack.c.h.b16 %v136
    %v328 = vunpack.c.l.b16 %v137
    %v329 = vunpack.c.h.b16 %v137
    %v330 = vunpack.c.l.b16 %v138
    %v331 = vunpack.c.h.b16 %v138
    %v332 = vunpack.c.l.b16 %v139
    %v333 = vunpack.c.h.b16 %v139
    %v334 = vunpack.c.l.b16 %v140
    %v335 = vunpack.c.h.b16 %v140
    %v336 = vunpack.c.l.b16 %v141
    %v337 = vunpack.c.h.b16 %v141
    %v338 = vunpack.c.l.b16 %v142
    %v339 = vunpack.c.h.b16 %v142
    %v340 = vunpack.c.l.b16 %v143
    %v341 = vunpack.c.h.b16 %v143
    %v342 = vunpack.c.l.b16 %v144
    %v343 = vunpack.c.h.b16 %v144
    %v344 = vunpack.c.l.b16 %v145
    %v345 = vunpack.c.h.b16 %v145
    %v346 = vunpack.c.l.b16 %v146
    %v347 = vunpack.c.h.b16 %v146
    %v348 = vunpack.c.l.b16 %v147
    %v349 = vunpack.c.h.b16 %v147
    %v350 = vunpack.c.l.b16 %v148
    %v351 = vunpack.c.h.b16 %v148
    %v352 = vunpack.c.l.b16 %v149
    %v353 = vunpack.c.h.b16 %v149
    %v354 = vunpack.c.l.b16 %v150
    %v355 = vunpack.c.h.b16 %v150
    %v356 = vunpack.c.l.b16 %v151
    %v357 = vunpack.c.h.b16 %v151
    %v358 = vunpack.c.l.b16 %v152
    %v359 = vunpack.c.h.b16 %v152
    %v360 = vunpack.c.l.b16 %v153
    %v361 = vunpack.c.h.b16 %v153
    %v362 = vunpack.c.l.b16 %v154
    %v363 = vunpack.c.h.b16 %v154
    %v364 = vunpack.c.l.b16 %v155
    %v365 = vunpack.c.h.b16 %v155
    %v366 = vunpack.c.l.b16 %v156
    %v367 = vunpack.c.h.b16 %v156
    %v368 = vunpack.c.l.b16 %v157
    %v369 = vunpack.c.h.b16 %v157
    %v370 = vunpack.c.l.b16 %v158
    %v371 = vunpack.c.h.b16 %v158
    %v372 = vunpack.c.l.b16 %v159
    %v373 = vunpack.c.h.b16 %v159
    %v374 = vpack.c.b16 %v250, %v246
    %v375 = vpack.c.b16 %v251, %v247
    %v376 = vpack.c.b16 %v252, %v248
    %v377 = vpack.c.b16 %v253, %v249
    %v378 = vpack.c.b16 %v258, %v254
    %v379 = vpack.c.b16 %v259, %v255
    %v380 = vpack.c.b16 %v260, %v256
    %v381 = vpack.c.b16 %v261, %v257
    %v382 = vpack.c.b16 %v266, %v262
    %v383 = vpack.c.b16 %v267, %v263
    %v384 = vpack.c.b16 %v268, %v264
    %v385 = vpack.c.b16 %v269, %v265
    %v386 = vpack.c.b16 %v274, %v270
    %v387 = vpack.c.b16 %v275, %v271
    %v388 = vpack.c.b16 %v276, %v272
    %v389 = vpack.c.b16 %v277, %v273
    %v390 = vpack.c.b16 %v282, %v278
    %v391 = vpack.c.b16 %v283, %v279
    %v392 = vpack.c.b16 %v284, %v280
    %v393 = vpack.c.b16 %v285, %v281
    %v394 = vpack.c.b16 %v290, %v286
    %v395 = vpack.c.b16 %v291, %v287
    %v396 = vpack.c.b16 %v292, %v288
    %v397 = vpack.c.b16 %v293, %v289
    %v398 = vpack.c.b16 %v298, %v294
    %v399 = vpack.c.b16 %v299, %v295
    %v400 = vpack.c.b16 %v300, %v296
    %v401 = vpack.c.b16 %v301, %v297
    %v402 = vpack.c.b16 %v306, %v302
    %v403 = vpack.c.b16 %v307, %v303
    %v404 = vpack.c.b16 %v308, %v304
    %v405 = vpack.c.b16 %v309, %v305
    %v406 = vpack.c.b16 %v314, %v310
    %v407 = vpack.c.b16 %v315, %v311
    %v408 = vpack.c.b16 %v316, %v312
    %v409 = vpack.c.b16 %v317, %v313
    %v410 = vpack.c.b16 %v322, %v318
    %v411 = vpack.c.b16 %v323, %v319
    %v412 = vpack.c.b16 %v324, %v320
    %v413 = vpack.c.b16 %v325, %v321
    %v414 = vpack.c.b16 %v330, %v326
    %v415 = vpack.c.b16 %v331, %v327
    %v416 = vpack.c.b16 %v332, %v328
    %v417 = vpack.c.b16 %v333, %v329
    %v418 = vpack.c.b16 %v338, %v334
    %v419 = vpack.c.b16 %v339, %v335
    %v420 = vpack.c.b16 %v340, %v336
    %v421 = vpack.c.b16 %v341, %v337
    %v422 = vpack.c.b16 %v346, %v342
    %v423 = vpack.c.b16 %v347, %v343
    %v424 = vpack.c.b16 %v348, %v344
    %v425 = vpack.c.b16 %v349, %v345
    %v426 = vpack.c.b16 %v354, %v350
    %v427 = vpack.c.b16 %v355, %v351
    %v428 = vpack.c.b16 %v356, %v352
    %v429 = vpack.c.b16 %v357, %v353
    %v430 = vpack.c.b16 %v362, %v358
    %v431 = vpack.c.b16 %v363, %v359
    %v432 = vpack.c.b16 %v364, %v360
    %v433 = vpack.c.b16 %v365, %v361
    %v434 = vpack.c.b16 %v370, %v366
    %v435 = vpack.c.b16 %v371, %v367
    %v436 = vpack.c.b16 %v372, %v368
    %v437 = vpack.c.b16 %v373, %v369
    %502 = vmatprep.subr.bf16.mxu0 %v403
    %503 = vmatpush1.bf16.msra.mxu0 %v402
    %504 = vmatprep.subr.bf16.mxu0 %v399
    %505 = vmatpush1.bf16.msra.mxu0 %v398
    %506 = vmatprep.subr.bf16.mxu0 %v395
    %507 = vmatpush1.bf16.msra.mxu0 %v394
    %508 = vmatprep.subr.bf16.mxu0 %v391
    %509 = vmatpush1.bf16.msra.mxu0 %v390
    %510 = vmatprep.subr.bf16.mxu0 %v387
    %511 = vmatpush1.bf16.msra.mxu0 %v386
    %512 = vmatprep.subr.bf16.mxu0 %v383
    %513 = vmatpush1.bf16.msra.mxu0 %v382
    %514 = vmatprep.subr.bf16.mxu0 %v379
    %515 = vmatpush1.bf16.msra.mxu0 %v378
    %516 = vmatprep.subr.bf16.mxu0 %v375
    %517 = vmatpush1.bf16.msra.mxu0 %v374
    %518 = vmatprep.subr.bf16.mxu0 %v435
    %519 = vmatpush2.bf16.msra.mxu0 %v434
    %520 = vmatprep.subr.bf16.mxu0 %v431
    %521 = vmatpush2.bf16.msra.mxu0 %v430
    %522 = vmatprep.subr.bf16.mxu0 %v427
    %523 = vmatpush2.bf16.msra.mxu0 %v426
    %524 = vmatprep.subr.bf16.mxu0 %v423
    %525 = vmatpush2.bf16.msra.mxu0 %v422
    %526 = vmatprep.subr.bf16.mxu0 %v419
    %527 = vmatpush2.bf16.msra.mxu0 %v418
    %528 = vmatprep.subr.bf16.mxu0 %v415
    %529 = vmatpush2.bf16.msra.mxu0 %v414
    %530 = vmatprep.subr.bf16.mxu0 %v411
    %531 = vmatpush2.bf16.msra.mxu0 %v410
    %532 = vmatprep.subr.bf16.mxu0 %v407
    %533 = vmatpush2.bf16.msra.mxu0 %v406
    %534 = vmatprep.mubr.bf16.mxu0 %v95
    %535 = vmatmul.mubr.bf16.gmra.mxu0 %v94
    %v536 = vpop.f32.mrf.mxu0
    %v537 = vadd.f32 %v165, %v536
    %v538 = vpop.f32.mrf.mxu0
    %v539 = vadd.f32 %v169, %v538
    %v540 = vpop.f32.mrf.mxu0
    %v541 = vpop.f32.mrf.mxu0
    %542 = vdwg.mxu0
    %543 = vmatprep.subr.bf16.mxu0 %v405
    %544 = vmatpush1.bf16.msra.mxu0 %v404
    %545 = vmatprep.subr.bf16.mxu0 %v401
    %546 = vmatpush1.bf16.msra.mxu0 %v400
    %547 = vmatprep.subr.bf16.mxu0 %v397
    %548 = vmatpush1.bf16.msra.mxu0 %v396
    %549 = vmatprep.subr.bf16.mxu0 %v393
    %550 = vmatpush1.bf16.msra.mxu0 %v392
    %551 = vmatprep.subr.bf16.mxu0 %v389
    %552 = vmatpush1.bf16.msra.mxu0 %v388
    %553 = vmatprep.subr.bf16.mxu0 %v385
    %554 = vmatpush1.bf16.msra.mxu0 %v384
    %555 = vmatprep.subr.bf16.mxu0 %v381
    %556 = vmatpush1.bf16.msra.mxu0 %v380
    %557 = vmatprep.subr.bf16.mxu0 %v377
    %558 = vmatpush1.bf16.msra.mxu0 %v376
    %559 = vmatprep.subr.bf16.mxu0 %v437
    %560 = vmatpush2.bf16.msra.mxu0 %v436
    %561 = vmatprep.subr.bf16.mxu0 %v433
    %562 = vmatpush2.bf16.msra.mxu0 %v432
    %563 = vmatprep.subr.bf16.mxu0 %v429
    %564 = vmatpush2.bf16.msra.mxu0 %v428
    %565 = vmatprep.subr.bf16.mxu0 %v425
    %566 = vmatpush2.bf16.msra.mxu0 %v424
    %567 = vmatprep.subr.bf16.mxu0 %v421
    %568 = vmatpush2.bf16.msra.mxu0 %v420
    %569 = vmatprep.subr.bf16.mxu0 %v417
    %570 = vmatpush2.bf16.msra.mxu0 %v416
    %571 = vmatprep.subr.bf16.mxu0 %v413
    %572 = vmatpush2.bf16.msra.mxu0 %v412
    %573 = vmatprep.subr.bf16.mxu0 %v409
    %574 = vmatpush2.bf16.msra.mxu0 %v408
    %575 = vmatprep.mubr.bf16.mxu0 %v95
    %576 = vmatmul.mubr.bf16.gmra.mxu0 %v94
    %v577 = vpop.f32.mrf.mxu0
    %v578 = vadd.f32 %v173, %v577
    %v579 = vpop.f32.mrf.mxu0
    %v580 = vadd.f32 %v177, %v579
    %v581 = vpop.f32.mrf.mxu0
    %v582 = vpop.f32.mrf.mxu0
    %583 = vdwg.mxu0
    %vm584 = vcmp.gt.f32.partialorder %v537, 0.0
    %vm585 = vcmp.gt.f32.partialorder %v539, 0.0
    %vm586 = vcmp.gt.f32.partialorder %v578, 0.0
    %vm587 = vcmp.gt.f32.partialorder %v580, 0.0
    %v588 = vmul.f32 %v537, 0.001
    %v589 = vmul.f32 %v539, 0.001
    %v590 = vmul.f32 %v578, 0.001
    %v591 = vmul.f32 %v580, 0.001
    %v592 = vsel %vm584, %v537, %v588
    %v593 = vsel %vm585, %v539, %v589
    %v594 = vsel %vm586, %v578, %v590
    %v595 = vsel %vm587, %v580, %v591
    %v596 = vpack.c.bf16 %v592, %v592
    %v597 = vpack.c.bf16 %v593, %v593
    %v598 = vpack.c.bf16 %v594, %v594
    %v599 = vpack.c.bf16 %v595, %v595
    %v600 = vld [vmem:[#allocation8] sm:$0xff]
    %v601 = vld [vmem:[#allocation8 + $0x8] sm:$0xff]
    %v602 = vld [vmem:[#allocation8 + $0x10] sm:$0xff]
    %v603 = vld [vmem:[#allocation8 + $0x18] sm:$0xff]
    %v604 = vld [vmem:[#allocation8 + $0x20] sm:$0xff]
    %v605 = vld [vmem:[#allocation8 + $0x28] sm:$0xff]
    %v606 = vld [vmem:[#allocation8 + $0x30] sm:$0xff]
    %v607 = vld [vmem:[#allocation8 + $0x38] sm:$0xff]
    %v608 = vld [vmem:[#allocation8 + $0x40] sm:$0xff]
    %v609 = vld [vmem:[#allocation8 + $0x48] sm:$0xff]
    %v610 = vld [vmem:[#allocation8 + $0x50] sm:$0xff]
    %v611 = vld [vmem:[#allocation8 + $0x58] sm:$0xff]
    %v612 = vld [vmem:[#allocation8 + $0x60] sm:$0xff]
    %v613 = vld [vmem:[#allocation8 + $0x68] sm:$0xff]
    %v614 = vld [vmem:[#allocation8 + $0x70] sm:$0xff]
    %v615 = vld [vmem:[#allocation8 + $0x78] sm:$0xff]
    %v616 = vld [vmem:[#allocation8 + $0x80] sm:$0xff]
    %v617 = vld [vmem:[#allocation8 + $0x88] sm:$0xff]
    %v618 = vld [vmem:[#allocation8 + $0x90] sm:$0xff]
    %v619 = vld [vmem:[#allocation8 + $0x98] sm:$0xff]
    %v620 = vld [vmem:[#allocation8 + $0xa0] sm:$0xff]
    %v621 = vld [vmem:[#allocation8 + $0xa8] sm:$0xff]
    %v622 = vld [vmem:[#allocation8 + $0xb0] sm:$0xff]
    %v623 = vld [vmem:[#allocation8 + $0xb8] sm:$0xff]
    %v624 = vld [vmem:[#allocation8 + $0xc0] sm:$0xff]
    %v625 = vld [vmem:[#allocation8 + $0xc8] sm:$0xff]
    %v626 = vld [vmem:[#allocation8 + $0xd0] sm:$0xff]
    %v627 = vld [vmem:[#allocation8 + $0xd8] sm:$0xff]
    %v628 = vld [vmem:[#allocation8 + $0xe0] sm:$0xff]
    %v629 = vld [vmem:[#allocation8 + $0xe8] sm:$0xff]
    %v630 = vld [vmem:[#allocation8 + $0xf0] sm:$0xff]
    %v631 = vld [vmem:[#allocation8 + $0xf8] sm:$0xff]
    %v632 = vld [vmem:[#allocation8 + $0x100] sm:$0xff]
    %v633 = vld [vmem:[#allocation8 + $0x108] sm:$0xff]
    %v634 = vld [vmem:[#allocation8 + $0x110] sm:$0xff]
    %v635 = vld [vmem:[#allocation8 + $0x118] sm:$0xff]
    %v636 = vld [vmem:[#allocation8 + $0x120] sm:$0xff]
    %v637 = vld [vmem:[#allocation8 + $0x128] sm:$0xff]
    %v638 = vld [vmem:[#allocation8 + $0x130] sm:$0xff]
    %v639 = vld [vmem:[#allocation8 + $0x138] sm:$0xff]
    %v640 = vld [vmem:[#allocation8 + $0x140] sm:$0xff]
    %v641 = vld [vmem:[#allocation8 + $0x148] sm:$0xff]
    %v642 = vld [vmem:[#allocation8 + $0x150] sm:$0xff]
    %v643 = vld [vmem:[#allocation8 + $0x158] sm:$0xff]
    %v644 = vld [vmem:[#allocation8 + $0x160] sm:$0xff]
    %v645 = vld [vmem:[#allocation8 + $0x168] sm:$0xff]
    %v646 = vld [vmem:[#allocation8 + $0x170] sm:$0xff]
    %v647 = vld [vmem:[#allocation8 + $0x178] sm:$0xff]
    %v648 = vld [vmem:[#allocation8 + $0x180] sm:$0xff]
    %v649 = vld [vmem:[#allocation8 + $0x188] sm:$0xff]
    %v650 = vld [vmem:[#allocation8 + $0x190] sm:$0xff]
    %v651 = vld [vmem:[#allocation8 + $0x198] sm:$0xff]
    %v652 = vld [vmem:[#allocation8 + $0x1a0] sm:$0xff]
    %v653 = vld [vmem:[#allocation8 + $0x1a8] sm:$0xff]
    %v654 = vld [vmem:[#allocation8 + $0x1b0] sm:$0xff]
    %v655 = vld [vmem:[#allocation8 + $0x1b8] sm:$0xff]
    %v656 = vld [vmem:[#allocation8 + $0x1c0] sm:$0xff]
    %v657 = vld [vmem:[#allocation8 + $0x1c8] sm:$0xff]
    %v658 = vld [vmem:[#allocation8 + $0x1d0] sm:$0xff]
    %v659 = vld [vmem:[#allocation8 + $0x1d8] sm:$0xff]
    %v660 = vld [vmem:[#allocation8 + $0x1e0] sm:$0xff]
    %v661 = vld [vmem:[#allocation8 + $0x1e8] sm:$0xff]
    %v662 = vld [vmem:[#allocation8 + $0x1f0] sm:$0xff]
    %v663 = vld [vmem:[#allocation8 + $0x1f8] sm:$0xff]
    %v664 = vld [vmem:[#allocation8 + $0x200] sm:$0xff]
    %v665 = vld [vmem:[#allocation8 + $0x208] sm:$0xff]
    %v666 = vld [vmem:[#allocation8 + $0x210] sm:$0xff]
    %v667 = vld [vmem:[#allocation8 + $0x218] sm:$0xff]
    %v668 = vld [vmem:[#allocation8 + $0x220] sm:$0xff]
    %v669 = vld [vmem:[#allocation8 + $0x228] sm:$0xff]
    %v670 = vld [vmem:[#allocation8 + $0x230] sm:$0xff]
    %v671 = vld [vmem:[#allocation8 + $0x238] sm:$0xff]
    %v672 = vld [vmem:[#allocation8 + $0x240] sm:$0xff]
    %v673 = vld [vmem:[#allocation8 + $0x248] sm:$0xff]
    %v674 = vld [vmem:[#allocation8 + $0x250] sm:$0xff]
    %v675 = vld [vmem:[#allocation8 + $0x258] sm:$0xff]
    %v676 = vld [vmem:[#allocation8 + $0x260] sm:$0xff]
    %v677 = vld [vmem:[#allocation8 + $0x268] sm:$0xff]
    %v678 = vld [vmem:[#allocation8 + $0x270] sm:$0xff]
    %v679 = vld [vmem:[#allocation8 + $0x278] sm:$0xff]
    %v680 = vld [vmem:[#allocation8 + $0x280] sm:$0xff]
    %v681 = vld [vmem:[#allocation8 + $0x288] sm:$0xff]
    %v682 = vld [vmem:[#allocation8 + $0x290] sm:$0xff]
    %v683 = vld [vmem:[#allocation8 + $0x298] sm:$0xff]
    %v684 = vld [vmem:[#allocation8 + $0x2a0] sm:$0xff]
    %v685 = vld [vmem:[#allocation8 + $0x2a8] sm:$0xff]
    %v686 = vld [vmem:[#allocation8 + $0x2b0] sm:$0xff]
    %v687 = vld [vmem:[#allocation8 + $0x2b8] sm:$0xff]
    %v688 = vld [vmem:[#allocation8 + $0x2c0] sm:$0xff]
    %v689 = vld [vmem:[#allocation8 + $0x2c8] sm:$0xff]
    %v690 = vld [vmem:[#allocation8 + $0x2d0] sm:$0xff]
    %v691 = vld [vmem:[#allocation8 + $0x2d8] sm:$0xff]
    %v692 = vld [vmem:[#allocation8 + $0x2e0] sm:$0xff]
    %v693 = vld [vmem:[#allocation8 + $0x2e8] sm:$0xff]
    %v694 = vld [vmem:[#allocation8 + $0x2f0] sm:$0xff]
    %v695 = vld [vmem:[#allocation8 + $0x2f8] sm:$0xff]
    %v696 = vld [vmem:[#allocation8 + $0x300] sm:$0xff]
    %v697 = vld [vmem:[#allocation8 + $0x308] sm:$0xff]
    %v698 = vld [vmem:[#allocation8 + $0x310] sm:$0xff]
    %v699 = vld [vmem:[#allocation8 + $0x318] sm:$0xff]
    %v700 = vld [vmem:[#allocation8 + $0x320] sm:$0xff]
    %v701 = vld [vmem:[#allocation8 + $0x328] sm:$0xff]
    %v702 = vld [vmem:[#allocation8 + $0x330] sm:$0xff]
    %v703 = vld [vmem:[#allocation8 + $0x338] sm:$0xff]
    %v704 = vld [vmem:[#allocation8 + $0x340] sm:$0xff]
    %v705 = vld [vmem:[#allocation8 + $0x348] sm:$0xff]
    %v706 = vld [vmem:[#allocation8 + $0x350] sm:$0xff]
    %v707 = vld [vmem:[#allocation8 + $0x358] sm:$0xff]
    %v708 = vld [vmem:[#allocation8 + $0x360] sm:$0xff]
    %v709 = vld [vmem:[#allocation8 + $0x368] sm:$0xff]
    %v710 = vld [vmem:[#allocation8 + $0x370] sm:$0xff]
    %v711 = vld [vmem:[#allocation8 + $0x378] sm:$0xff]
    %v712 = vld [vmem:[#allocation8 + $0x380] sm:$0xff]
    %v713 = vld [vmem:[#allocation8 + $0x388] sm:$0xff]
    %v714 = vld [vmem:[#allocation8 + $0x390] sm:$0xff]
    %v715 = vld [vmem:[#allocation8 + $0x398] sm:$0xff]
    %v716 = vld [vmem:[#allocation8 + $0x3a0] sm:$0xff]
    %v717 = vld [vmem:[#allocation8 + $0x3a8] sm:$0xff]
    %v718 = vld [vmem:[#allocation8 + $0x3b0] sm:$0xff]
    %v719 = vld [vmem:[#allocation8 + $0x3b8] sm:$0xff]
    %v720 = vld [vmem:[#allocation8 + $0x3c0] sm:$0xff]
    %v721 = vld [vmem:[#allocation8 + $0x3c8] sm:$0xff]
    %v722 = vld [vmem:[#allocation8 + $0x3d0] sm:$0xff]
    %v723 = vld [vmem:[#allocation8 + $0x3d8] sm:$0xff]
    %v724 = vld [vmem:[#allocation8 + $0x3e0] sm:$0xff]
    %v725 = vld [vmem:[#allocation8 + $0x3e8] sm:$0xff]
    %v726 = vld [vmem:[#allocation8 + $0x3f0] sm:$0xff]
    %v727 = vld [vmem:[#allocation8 + $0x3f8] sm:$0xff]
    %v728 = vld [vmem:[%s4] sm:$0xf]
    %v730 = vlaneseq
    %v731 = vshrl.u32 %v730, 7
    %v732 = vsub.s32 0, %v731
    %v733 = vrot.slane %v728, %v732
    %v734 = vlaneseq
    %v735 = vshrl.u32 %v734, 7
    %v736 = vsub.s32 1, %v735
    %v737 = vrot.slane %v728, %v736
    %v738 = vlaneseq
    %v739 = vshrl.u32 %v738, 7
    %v740 = vsub.s32 2, %v739
    %v741 = vrot.slane %v728, %v740
    %v742 = vlaneseq
    %v743 = vshrl.u32 %v742, 7
    %v744 = vsub.s32 3, %v743
    %v745 = vrot.slane %v728, %v744
    %v878 = vunpack.c.l.b16 %v600
    %v879 = vunpack.c.h.b16 %v600
    %v880 = vunpack.c.l.b16 %v601
    %v881 = vunpack.c.h.b16 %v601
    %v882 = vunpack.c.l.b16 %v602
    %v883 = vunpack.c.h.b16 %v602
    %v884 = vunpack.c.l.b16 %v603
    %v885 = vunpack.c.h.b16 %v603
    %v886 = vunpack.c.l.b16 %v604
    %v887 = vunpack.c.h.b16 %v604
    %v888 = vunpack.c.l.b16 %v605
    %v889 = vunpack.c.h.b16 %v605
    %v890 = vunpack.c.l.b16 %v606
    %v891 = vunpack.c.h.b16 %v606
    %v892 = vunpack.c.l.b16 %v607
    %v893 = vunpack.c.h.b16 %v607
    %v894 = vunpack.c.l.b16 %v608
    %v895 = vunpack.c.h.b16 %v608
    %v896 = vunpack.c.l.b16 %v609
    %v897 = vunpack.c.h.b16 %v609
    %v898 = vunpack.c.l.b16 %v610
    %v899 = vunpack.c.h.b16 %v610
    %v900 = vunpack.c.l.b16 %v611
    %v901 = vunpack.c.h.b16 %v611
    %v902 = vunpack.c.l.b16 %v612
    %v903 = vunpack.c.h.b16 %v612
    %v904 = vunpack.c.l.b16 %v613
    %v905 = vunpack.c.h.b16 %v613
    %v906 = vunpack.c.l.b16 %v614
    %v907 = vunpack.c.h.b16 %v614
    %v908 = vunpack.c.l.b16 %v615
    %v909 = vunpack.c.h.b16 %v615
    %v910 = vunpack.c.l.b16 %v616
    %v911 = vunpack.c.h.b16 %v616
    %v912 = vunpack.c.l.b16 %v617
    %v913 = vunpack.c.h.b16 %v617
    %v914 = vunpack.c.l.b16 %v618
    %v915 = vunpack.c.h.b16 %v618
    %v916 = vunpack.c.l.b16 %v619
    %v917 = vunpack.c.h.b16 %v619
    %v918 = vunpack.c.l.b16 %v620
    %v919 = vunpack.c.h.b16 %v620
    %v920 = vunpack.c.l.b16 %v621
    %v921 = vunpack.c.h.b16 %v621
    %v922 = vunpack.c.l.b16 %v622
    %v923 = vunpack.c.h.b16 %v622
    %v924 = vunpack.c.l.b16 %v623
    %v925 = vunpack.c.h.b16 %v623
    %v926 = vunpack.c.l.b16 %v624
    %v927 = vunpack.c.h.b16 %v624
    %v928 = vunpack.c.l.b16 %v625
    %v929 = vunpack.c.h.b16 %v625
    %v930 = vunpack.c.l.b16 %v626
    %v931 = vunpack.c.h.b16 %v626
    %v932 = vunpack.c.l.b16 %v627
    %v933 = vunpack.c.h.b16 %v627
    %v934 = vunpack.c.l.b16 %v628
    %v935 = vunpack.c.h.b16 %v628
    %v936 = vunpack.c.l.b16 %v629
    %v937 = vunpack.c.h.b16 %v629
    %v938 = vunpack.c.l.b16 %v630
    %v939 = vunpack.c.h.b16 %v630
    %v940 = vunpack.c.l.b16 %v631
    %v941 = vunpack.c.h.b16 %v631
    %v942 = vunpack.c.l.b16 %v632
    %v943 = vunpack.c.h.b16 %v632
    %v944 = vunpack.c.l.b16 %v633
    %v945 = vunpack.c.h.b16 %v633
    %v946 = vunpack.c.l.b16 %v634
    %v947 = vunpack.c.h.b16 %v634
    %v948 = vunpack.c.l.b16 %v635
    %v949 = vunpack.c.h.b16 %v635
    %v950 = vunpack.c.l.b16 %v636
    %v951 = vunpack.c.h.b16 %v636
    %v952 = vunpack.c.l.b16 %v637
    %v953 = vunpack.c.h.b16 %v637
    %v954 = vunpack.c.l.b16 %v638
    %v955 = vunpack.c.h.b16 %v638
    %v956 = vunpack.c.l.b16 %v639
    %v957 = vunpack.c.h.b16 %v639
    %v958 = vunpack.c.l.b16 %v640
    %v959 = vunpack.c.h.b16 %v640
    %v960 = vunpack.c.l.b16 %v641
    %v961 = vunpack.c.h.b16 %v641
    %v962 = vunpack.c.l.b16 %v642
    %v963 = vunpack.c.h.b16 %v642
    %v964 = vunpack.c.l.b16 %v643
    %v965 = vunpack.c.h.b16 %v643
    %v966 = vunpack.c.l.b16 %v644
    %v967 = vunpack.c.h.b16 %v644
    %v968 = vunpack.c.l.b16 %v645
    %v969 = vunpack.c.h.b16 %v645
    %v970 = vunpack.c.l.b16 %v646
    %v971 = vunpack.c.h.b16 %v646
    %v972 = vunpack.c.l.b16 %v647
    %v973 = vunpack.c.h.b16 %v647
    %v974 = vunpack.c.l.b16 %v648
    %v975 = vunpack.c.h.b16 %v648
    %v976 = vunpack.c.l.b16 %v649
    %v977 = vunpack.c.h.b16 %v649
    %v978 = vunpack.c.l.b16 %v650
    %v979 = vunpack.c.h.b16 %v650
    %v980 = vunpack.c.l.b16 %v651
    %v981 = vunpack.c.h.b16 %v651
    %v982 = vunpack.c.l.b16 %v652
    %v983 = vunpack.c.h.b16 %v652
    %v984 = vunpack.c.l.b16 %v653
    %v985 = vunpack.c.h.b16 %v653
    %v986 = vunpack.c.l.b16 %v654
    %v987 = vunpack.c.h.b16 %v654
    %v988 = vunpack.c.l.b16 %v655
    %v989 = vunpack.c.h.b16 %v655
    %v990 = vunpack.c.l.b16 %v656
    %v991 = vunpack.c.h.b16 %v656
    %v992 = vunpack.c.l.b16 %v657
    %v993 = vunpack.c.h.b16 %v657
    %v994 = vunpack.c.l.b16 %v658
    %v995 = vunpack.c.h.b16 %v658
    %v996 = vunpack.c.l.b16 %v659
    %v997 = vunpack.c.h.b16 %v659
    %v998 = vunpack.c.l.b16 %v660
    %v999 = vunpack.c.h.b16 %v660
    %v1000 = vunpack.c.l.b16 %v661
    %v1001 = vunpack.c.h.b16 %v661
    %v1002 = vunpack.c.l.b16 %v662
    %v1003 = vunpack.c.h.b16 %v662
    %v1004 = vunpack.c.l.b16 %v663
    %v1005 = vunpack.c.h.b16 %v663
    %v1006 = vunpack.c.l.b16 %v664
    %v1007 = vunpack.c.h.b16 %v664
    %v1008 = vunpack.c.l.b16 %v665
    %v1009 = vunpack.c.h.b16 %v665
    %v1010 = vunpack.c.l.b16 %v666
    %v1011 = vunpack.c.h.b16 %v666
    %v1012 = vunpack.c.l.b16 %v667
    %v1013 = vunpack.c.h.b16 %v667
    %v1014 = vunpack.c.l.b16 %v668
    %v1015 = vunpack.c.h.b16 %v668
    %v1016 = vunpack.c.l.b16 %v669
    %v1017 = vunpack.c.h.b16 %v669
    %v1018 = vunpack.c.l.b16 %v670
    %v1019 = vunpack.c.h.b16 %v670
    %v1020 = vunpack.c.l.b16 %v671
    %v1021 = vunpack.c.h.b16 %v671
    %v1022 = vunpack.c.l.b16 %v672
    %v1023 = vunpack.c.h.b16 %v672
    %v1024 = vunpack.c.l.b16 %v673
    %v1025 = vunpack.c.h.b16 %v673
    %v1026 = vunpack.c.l.b16 %v674
    %v1027 = vunpack.c.h.b16 %v674
    %v1028 = vunpack.c.l.b16 %v675
    %v1029 = vunpack.c.h.b16 %v675
    %v1030 = vunpack.c.l.b16 %v676
    %v1031 = vunpack.c.h.b16 %v676
    %v1032 = vunpack.c.l.b16 %v677
    %v1033 = vunpack.c.h.b16 %v677
    %v1034 = vunpack.c.l.b16 %v678
    %v1035 = vunpack.c.h.b16 %v678
    %v1036 = vunpack.c.l.b16 %v679
    %v1037 = vunpack.c.h.b16 %v679
    %v1038 = vunpack.c.l.b16 %v680
    %v1039 = vunpack.c.h.b16 %v680
    %v1040 = vunpack.c.l.b16 %v681
    %v1041 = vunpack.c.h.b16 %v681
    %v1042 = vunpack.c.l.b16 %v682
    %v1043 = vunpack.c.h.b16 %v682
    %v1044 = vunpack.c.l.b16 %v683
    %v1045 = vunpack.c.h.b16 %v683
    %v1046 = vunpack.c.l.b16 %v684
    %v1047 = vunpack.c.h.b16 %v684
    %v1048 = vunpack.c.l.b16 %v685
    %v1049 = vunpack.c.h.b16 %v685
    %v1050 = vunpack.c.l.b16 %v686
    %v1051 = vunpack.c.h.b16 %v686
    %v1052 = vunpack.c.l.b16 %v687
    %v1053 = vunpack.c.h.b16 %v687
    %v1054 = vunpack.c.l.b16 %v688
    %v1055 = vunpack.c.h.b16 %v688
    %v1056 = vunpack.c.l.b16 %v689
    %v1057 = vunpack.c.h.b16 %v689
    %v1058 = vunpack.c.l.b16 %v690
    %v1059 = vunpack.c.h.b16 %v690
    %v1060 = vunpack.c.l.b16 %v691
    %v1061 = vunpack.c.h.b16 %v691
    %v1062 = vunpack.c.l.b16 %v692
    %v1063 = vunpack.c.h.b16 %v692
    %v1064 = vunpack.c.l.b16 %v693
    %v1065 = vunpack.c.h.b16 %v693
    %v1066 = vunpack.c.l.b16 %v694
    %v1067 = vunpack.c.h.b16 %v694
    %v1068 = vunpack.c.l.b16 %v695
    %v1069 = vunpack.c.h.b16 %v695
    %v1070 = vunpack.c.l.b16 %v696
    %v1071 = vunpack.c.h.b16 %v696
    %v1072 = vunpack.c.l.b16 %v697
    %v1073 = vunpack.c.h.b16 %v697
    %v1074 = vunpack.c.l.b16 %v698
    %v1075 = vunpack.c.h.b16 %v698
    %v1076 = vunpack.c.l.b16 %v699
    %v1077 = vunpack.c.h.b16 %v699
    %v1078 = vunpack.c.l.b16 %v700
    %v1079 = vunpack.c.h.b16 %v700
    %v1080 = vunpack.c.l.b16 %v701
    %v1081 = vunpack.c.h.b16 %v701
    %v1082 = vunpack.c.l.b16 %v702
    %v1083 = vunpack.c.h.b16 %v702
    %v1084 = vunpack.c.l.b16 %v703
    %v1085 = vunpack.c.h.b16 %v703
    %v1086 = vunpack.c.l.b16 %v704
    %v1087 = vunpack.c.h.b16 %v704
    %v1088 = vunpack.c.l.b16 %v705
    %v1089 = vunpack.c.h.b16 %v705
    %v1090 = vunpack.c.l.b16 %v706
    %v1091 = vunpack.c.h.b16 %v706
    %v1092 = vunpack.c.l.b16 %v707
    %v1093 = vunpack.c.h.b16 %v707
    %v1094 = vunpack.c.l.b16 %v708
    %v1095 = vunpack.c.h.b16 %v708
    %v1096 = vunpack.c.l.b16 %v709
    %v1097 = vunpack.c.h.b16 %v709
    %v1098 = vunpack.c.l.b16 %v710
    %v1099 = vunpack.c.h.b16 %v710
    %v1100 = vunpack.c.l.b16 %v711
    %v1101 = vunpack.c.h.b16 %v711
    %v1102 = vunpack.c.l.b16 %v712
    %v1103 = vunpack.c.h.b16 %v712
    %v1104 = vunpack.c.l.b16 %v713
    %v1105 = vunpack.c.h.b16 %v713
    %v1106 = vunpack.c.l.b16 %v714
    %v1107 = vunpack.c.h.b16 %v714
    %v1108 = vunpack.c.l.b16 %v715
    %v1109 = vunpack.c.h.b16 %v715
    %v1110 = vunpack.c.l.b16 %v716
    %v1111 = vunpack.c.h.b16 %v716
    %v1112 = vunpack.c.l.b16 %v717
    %v1113 = vunpack.c.h.b16 %v717
    %v1114 = vunpack.c.l.b16 %v718
    %v1115 = vunpack.c.h.b16 %v718
    %v1116 = vunpack.c.l.b16 %v719
    %v1117 = vunpack.c.h.b16 %v719
    %v1118 = vunpack.c.l.b16 %v720
    %v1119 = vunpack.c.h.b16 %v720
    %v1120 = vunpack.c.l.b16 %v721
    %v1121 = vunpack.c.h.b16 %v721
    %v1122 = vunpack.c.l.b16 %v722
    %v1123 = vunpack.c.h.b16 %v722
    %v1124 = vunpack.c.l.b16 %v723
    %v1125 = vunpack.c.h.b16 %v723
    %v1126 = vunpack.c.l.b16 %v724
    %v1127 = vunpack.c.h.b16 %v724
    %v1128 = vunpack.c.l.b16 %v725
    %v1129 = vunpack.c.h.b16 %v725
    %v1130 = vunpack.c.l.b16 %v726
    %v1131 = vunpack.c.h.b16 %v726
    %v1132 = vunpack.c.l.b16 %v727
    %v1133 = vunpack.c.h.b16 %v727
    %v1134 = vpack.c.b16 %v882, %v878
    %v1135 = vpack.c.b16 %v883, %v879
    %v1136 = vpack.c.b16 %v884, %v880
    %v1137 = vpack.c.b16 %v885, %v881
    %v1138 = vpack.c.b16 %v890, %v886
    %v1139 = vpack.c.b16 %v891, %v887
    %v1140 = vpack.c.b16 %v892, %v888
    %v1141 = vpack.c.b16 %v893, %v889
    %v1142 = vpack.c.b16 %v898, %v894
    %v1143 = vpack.c.b16 %v899, %v895
    %v1144 = vpack.c.b16 %v900, %v896
    %v1145 = vpack.c.b16 %v901, %v897
    %v1146 = vpack.c.b16 %v906, %v902
    %v1147 = vpack.c.b16 %v907, %v903
    %v1148 = vpack.c.b16 %v908, %v904
    %v1149 = vpack.c.b16 %v909, %v905
    %v1150 = vpack.c.b16 %v914, %v910
    %v1151 = vpack.c.b16 %v915, %v911
    %v1152 = vpack.c.b16 %v916, %v912
    %v1153 = vpack.c.b16 %v917, %v913
    %v1154 = vpack.c.b16 %v922, %v918
    %v1155 = vpack.c.b16 %v923, %v919
    %v1156 = vpack.c.b16 %v924, %v920
    %v1157 = vpack.c.b16 %v925, %v921
    %v1158 = vpack.c.b16 %v930, %v926
    %v1159 = vpack.c.b16 %v931, %v927
    %v1160 = vpack.c.b16 %v932, %v928
    %v1161 = vpack.c.b16 %v933, %v929
    %v1162 = vpack.c.b16 %v938, %v934
    %v1163 = vpack.c.b16 %v939, %v935
    %v1164 = vpack.c.b16 %v940, %v936
    %v1165 = vpack.c.b16 %v941, %v937
    %v1166 = vpack.c.b16 %v946, %v942
    %v1167 = vpack.c.b16 %v947, %v943
    %v1168 = vpack.c.b16 %v948, %v944
    %v1169 = vpack.c.b16 %v949, %v945
    %v1170 = vpack.c.b16 %v954, %v950
    %v1171 = vpack.c.b16 %v955, %v951
    %v1172 = vpack.c.b16 %v956, %v952
    %v1173 = vpack.c.b16 %v957, %v953
    %v1174 = vpack.c.b16 %v962, %v958
    %v1175 = vpack.c.b16 %v963, %v959
    %v1176 = vpack.c.b16 %v964, %v960
    %v1177 = vpack.c.b16 %v965, %v961
    %v1178 = vpack.c.b16 %v970, %v966
    %v1179 = vpack.c.b16 %v971, %v967
    %v1180 = vpack.c.b16 %v972, %v968
    %v1181 = vpack.c.b16 %v973, %v969
    %v1182 = vpack.c.b16 %v978, %v974
    %v1183 = vpack.c.b16 %v979, %v975
    %v1184 = vpack.c.b16 %v980, %v976
    %v1185 = vpack.c.b16 %v981, %v977
    %v1186 = vpack.c.b16 %v986, %v982
    %v1187 = vpack.c.b16 %v987, %v983
    %v1188 = vpack.c.b16 %v988, %v984
    %v1189 = vpack.c.b16 %v989, %v985
    %v1190 = vpack.c.b16 %v994, %v990
    %v1191 = vpack.c.b16 %v995, %v991
    %v1192 = vpack.c.b16 %v996, %v992
    %v1193 = vpack.c.b16 %v997, %v993
    %v1194 = vpack.c.b16 %v1002, %v998
    %v1195 = vpack.c.b16 %v1003, %v999
    %v1196 = vpack.c.b16 %v1004, %v1000
    %v1197 = vpack.c.b16 %v1005, %v1001
    %v1198 = vpack.c.b16 %v1010, %v1006
    %v1199 = vpack.c.b16 %v1011, %v1007
    %v1200 = vpack.c.b16 %v1012, %v1008
    %v1201 = vpack.c.b16 %v1013, %v1009
    %v1202 = vpack.c.b16 %v1018, %v1014
    %v1203 = vpack.c.b16 %v1019, %v1015
    %v1204 = vpack.c.b16 %v1020, %v1016
    %v1205 = vpack.c.b16 %v1021, %v1017
    %v1206 = vpack.c.b16 %v1026, %v1022
    %v1207 = vpack.c.b16 %v1027, %v1023
    %v1208 = vpack.c.b16 %v1028, %v1024
    %v1209 = vpack.c.b16 %v1029, %v1025
    %v1210 = vpack.c.b16 %v1034, %v1030
    %v1211 = vpack.c.b16 %v1035, %v1031
    %v1212 = vpack.c.b16 %v1036, %v1032
    %v1213 = vpack.c.b16 %v1037, %v1033
    %v1214 = vpack.c.b16 %v1042, %v1038
    %v1215 = vpack.c.b16 %v1043, %v1039
    %v1216 = vpack.c.b16 %v1044, %v1040
    %v1217 = vpack.c.b16 %v1045, %v1041
    %v1218 = vpack.c.b16 %v1050, %v1046
    %v1219 = vpack.c.b16 %v1051, %v1047
    %v1220 = vpack.c.b16 %v1052, %v1048
    %v1221 = vpack.c.b16 %v1053, %v1049
    %v1222 = vpack.c.b16 %v1058, %v1054
    %v1223 = vpack.c.b16 %v1059, %v1055
    %v1224 = vpack.c.b16 %v1060, %v1056
    %v1225 = vpack.c.b16 %v1061, %v1057
    %v1226 = vpack.c.b16 %v1066, %v1062
    %v1227 = vpack.c.b16 %v1067, %v1063
    %v1228 = vpack.c.b16 %v1068, %v1064
    %v1229 = vpack.c.b16 %v1069, %v1065
    %v1230 = vpack.c.b16 %v1074, %v1070
    %v1231 = vpack.c.b16 %v1075, %v1071
    %v1232 = vpack.c.b16 %v1076, %v1072
    %v1233 = vpack.c.b16 %v1077, %v1073
    %v1234 = vpack.c.b16 %v1082, %v1078
    %v1235 = vpack.c.b16 %v1083, %v1079
    %v1236 = vpack.c.b16 %v1084, %v1080
    %v1237 = vpack.c.b16 %v1085, %v1081
    %v1238 = vpack.c.b16 %v1090, %v1086
    %v1239 = vpack.c.b16 %v1091, %v1087
    %v1240 = vpack.c.b16 %v1092, %v1088
    %v1241 = vpack.c.b16 %v1093, %v1089
    %v1242 = vpack.c.b16 %v1098, %v1094
    %v1243 = vpack.c.b16 %v1099, %v1095
    %v1244 = vpack.c.b16 %v1100, %v1096
    %v1245 = vpack.c.b16 %v1101, %v1097
    %v1246 = vpack.c.b16 %v1106, %v1102
    %v1247 = vpack.c.b16 %v1107, %v1103
    %v1248 = vpack.c.b16 %v1108, %v1104
    %v1249 = vpack.c.b16 %v1109, %v1105
    %v1250 = vpack.c.b16 %v1114, %v1110
    %v1251 = vpack.c.b16 %v1115, %v1111
    %v1252 = vpack.c.b16 %v1116, %v1112
    %v1253 = vpack.c.b16 %v1117, %v1113
    %v1254 = vpack.c.b16 %v1122, %v1118
    %v1255 = vpack.c.b16 %v1123, %v1119
    %v1256 = vpack.c.b16 %v1124, %v1120
    %v1257 = vpack.c.b16 %v1125, %v1121
    %v1258 = vpack.c.b16 %v1130, %v1126
    %v1259 = vpack.c.b16 %v1131, %v1127
    %v1260 = vpack.c.b16 %v1132, %v1128
    %v1261 = vpack.c.b16 %v1133, %v1129
    %1390 = vmatprep.subr.bf16.mxu0 %v1163
    %1391 = vmatpush1.bf16.msra.mxu0 %v1162
    %1392 = vmatprep.subr.bf16.mxu0 %v1159
    %1393 = vmatpush1.bf16.msra.mxu0 %v1158
    %1394 = vmatprep.subr.bf16.mxu0 %v1155
    %1395 = vmatpush1.bf16.msra.mxu0 %v1154
    %1396 = vmatprep.subr.bf16.mxu0 %v1151
    %1397 = vmatpush1.bf16.msra.mxu0 %v1150
    %1398 = vmatprep.subr.bf16.mxu0 %v1147
    %1399 = vmatpush1.bf16.msra.mxu0 %v1146
    %1400 = vmatprep.subr.bf16.mxu0 %v1143
    %1401 = vmatpush1.bf16.msra.mxu0 %v1142
    %1402 = vmatprep.subr.bf16.mxu0 %v1139
    %1403 = vmatpush1.bf16.msra.mxu0 %v1138
    %1404 = vmatprep.subr.bf16.mxu0 %v1135
    %1405 = vmatpush1.bf16.msra.mxu0 %v1134
    %1406 = vmatprep.subr.bf16.mxu0 %v1195
    %1407 = vmatpush2.bf16.msra.mxu0 %v1194
    %1408 = vmatprep.subr.bf16.mxu0 %v1191
    %1409 = vmatpush2.bf16.msra.mxu0 %v1190
    %1410 = vmatprep.subr.bf16.mxu0 %v1187
    %1411 = vmatpush2.bf16.msra.mxu0 %v1186
    %1412 = vmatprep.subr.bf16.mxu0 %v1183
    %1413 = vmatpush2.bf16.msra.mxu0 %v1182
    %1414 = vmatprep.subr.bf16.mxu0 %v1179
    %1415 = vmatpush2.bf16.msra.mxu0 %v1178
    %1416 = vmatprep.subr.bf16.mxu0 %v1175
    %1417 = vmatpush2.bf16.msra.mxu0 %v1174
    %1418 = vmatprep.subr.bf16.mxu0 %v1171
    %1419 = vmatpush2.bf16.msra.mxu0 %v1170
    %1420 = vmatprep.subr.bf16.mxu0 %v1167
    %1421 = vmatpush2.bf16.msra.mxu0 %v1166
    %1422 = vmatprep.mubr.bf16.mxu0 %v597
    %1423 = vmatmul.mubr.bf16.gmra.mxu0 %v596
    %v1424 = vpop.f32.mrf.mxu0
    %v1425 = vadd.f32 %v733, %v1424
    %v1426 = vpop.f32.mrf.mxu0
    %v1427 = vadd.f32 %v737, %v1426
    %v1428 = vpop.f32.mrf.mxu0
    %v1429 = vpop.f32.mrf.mxu0
    %1430 = vdwg.mxu0
    %1431 = vmatprep.subr.bf16.mxu0 %v1227
    %1432 = vmatpush1.bf16.msra.mxu0 %v1226
    %1433 = vmatprep.subr.bf16.mxu0 %v1223
    %1434 = vmatpush1.bf16.msra.mxu0 %v1222
    %1435 = vmatprep.subr.bf16.mxu0 %v1219
    %1436 = vmatpush1.bf16.msra.mxu0 %v1218
    %1437 = vmatprep.subr.bf16.mxu0 %v1215
    %1438 = vmatpush1.bf16.msra.mxu0 %v1214
    %1439 = vmatprep.subr.bf16.mxu0 %v1211
    %1440 = vmatpush1.bf16.msra.mxu0 %v1210
    %1441 = vmatprep.subr.bf16.mxu0 %v1207
    %1442 = vmatpush1.bf16.msra.mxu0 %v1206
    %1443 = vmatprep.subr.bf16.mxu0 %v1203
    %1444 = vmatpush1.bf16.msra.mxu0 %v1202
    %1445 = vmatprep.subr.bf16.mxu0 %v1199
    %1446 = vmatpush1.bf16.msra.mxu0 %v1198
    %1447 = vmatprep.subr.bf16.mxu0 %v1259
    %1448 = vmatpush2.bf16.msra.mxu0 %v1258
    %1449 = vmatprep.subr.bf16.mxu0 %v1255
    %1450 = vmatpush2.bf16.msra.mxu0 %v1254
    %1451 = vmatprep.subr.bf16.mxu0 %v1251
    %1452 = vmatpush2.bf16.msra.mxu0 %v1250
    %1453 = vmatprep.subr.bf16.mxu0 %v1247
    %1454 = vmatpush2.bf16.msra.mxu0 %v1246
    %1455 = vmatprep.subr.bf16.mxu0 %v1243
    %1456 = vmatpush2.bf16.msra.mxu0 %v1242
    %1457 = vmatprep.subr.bf16.mxu0 %v1239
    %1458 = vmatpush2.bf16.msra.mxu0 %v1238
    %1459 = vmatprep.subr.bf16.mxu0 %v1235
    %1460 = vmatpush2.bf16.msra.mxu0 %v1234
    %1461 = vmatprep.subr.bf16.mxu0 %v1231
    %1462 = vmatpush2.bf16.msra.mxu0 %v1230
    %1463 = vmatprep.mubr.bf16.mxu0 %v599
    %1464 = vmatmul.mubr.bf16.gmra.mxu0 %v598
    %v1465 = vpop.f32.mrf.mxu0
    %v1466 = vadd.f32 %v1425, %v1465
    %v1467 = vpop.f32.mrf.mxu0
    %v1468 = vadd.f32 %v1427, %v1467
    %v1469 = vpop.f32.mrf.mxu0
    %v1470 = vpop.f32.mrf.mxu0
    %1471 = vdwg.mxu0
    %1472 = vmatprep.subr.bf16.mxu0 %v1165
    %1473 = vmatpush1.bf16.msra.mxu0 %v1164
    %1474 = vmatprep.subr.bf16.mxu0 %v1161
    %1475 = vmatpush1.bf16.msra.mxu0 %v1160
    %1476 = vmatprep.subr.bf16.mxu0 %v1157
    %1477 = vmatpush1.bf16.msra.mxu0 %v1156
    %1478 = vmatprep.subr.bf16.mxu0 %v1153
    %1479 = vmatpush1.bf16.msra.mxu0 %v1152
    %1480 = vmatprep.subr.bf16.mxu0 %v1149
    %1481 = vmatpush1.bf16.msra.mxu0 %v1148
    %1482 = vmatprep.subr.bf16.mxu0 %v1145
    %1483 = vmatpush1.bf16.msra.mxu0 %v1144
    %1484 = vmatprep.subr.bf16.mxu0 %v1141
    %1485 = vmatpush1.bf16.msra.mxu0 %v1140
    %1486 = vmatprep.subr.bf16.mxu0 %v1137
    %1487 = vmatpush1.bf16.msra.mxu0 %v1136
    %1488 = vmatprep.subr.bf16.mxu0 %v1197
    %1489 = vmatpush2.bf16.msra.mxu0 %v1196
    %1490 = vmatprep.subr.bf16.mxu0 %v1193
    %1491 = vmatpush2.bf16.msra.mxu0 %v1192
    %1492 = vmatprep.subr.bf16.mxu0 %v1189
    %1493 = vmatpush2.bf16.msra.mxu0 %v1188
    %1494 = vmatprep.subr.bf16.mxu0 %v1185
    %1495 = vmatpush2.bf16.msra.mxu0 %v1184
    %1496 = vmatprep.subr.bf16.mxu0 %v1181
    %1497 = vmatpush2.bf16.msra.mxu0 %v1180
    %1498 = vmatprep.subr.bf16.mxu0 %v1177
    %1499 = vmatpush2.bf16.msra.mxu0 %v1176
    %1500 = vmatprep.subr.bf16.mxu0 %v1173
    %1501 = vmatpush2.bf16.msra.mxu0 %v1172
    %1502 = vmatprep.subr.bf16.mxu0 %v1169
    %1503 = vmatpush2.bf16.msra.mxu0 %v1168
    %1504 = vmatprep.mubr.bf16.mxu0 %v597
    %1505 = vmatmul.mubr.bf16.gmra.mxu0 %v596
    %v1506 = vpop.f32.mrf.mxu0
    %v1507 = vadd.f32 %v741, %v1506
    %v1508 = vpop.f32.mrf.mxu0
    %v1509 = vadd.f32 %v745, %v1508
    %v1510 = vpop.f32.mrf.mxu0
    %v1511 = vpop.f32.mrf.mxu0
    %1512 = vdwg.mxu0
    %1513 = vmatprep.subr.bf16.mxu0 %v1229
    %1514 = vmatpush1.bf16.msra.mxu0 %v1228
    %1515 = vmatprep.subr.bf16.mxu0 %v1225
    %1516 = vmatpush1.bf16.msra.mxu0 %v1224
    %1517 = vmatprep.subr.bf16.mxu0 %v1221
    %1518 = vmatpush1.bf16.msra.mxu0 %v1220
    %1519 = vmatprep.subr.bf16.mxu0 %v1217
    %1520 = vmatpush1.bf16.msra.mxu0 %v1216
    %1521 = vmatprep.subr.bf16.mxu0 %v1213
    %1522 = vmatpush1.bf16.msra.mxu0 %v1212
    %1523 = vmatprep.subr.bf16.mxu0 %v1209
    %1524 = vmatpush1.bf16.msra.mxu0 %v1208
    %1525 = vmatprep.subr.bf16.mxu0 %v1205
    %1526 = vmatpush1.bf16.msra.mxu0 %v1204
    %1527 = vmatprep.subr.bf16.mxu0 %v1201
    %1528 = vmatpush1.bf16.msra.mxu0 %v1200
    %1529 = vmatprep.subr.bf16.mxu0 %v1261
    %1530 = vmatpush2.bf16.msra.mxu0 %v1260
    %1531 = vmatprep.subr.bf16.mxu0 %v1257
    %1532 = vmatpush2.bf16.msra.mxu0 %v1256
    %1533 = vmatprep.subr.bf16.mxu0 %v1253
    %1534 = vmatpush2.bf16.msra.mxu0 %v1252
    %1535 = vmatprep.subr.bf16.mxu0 %v1249
    %1536 = vmatpush2.bf16.msra.mxu0 %v1248
    %1537 = vmatprep.subr.bf16.mxu0 %v1245
    %1538 = vmatpush2.bf16.msra.mxu0 %v1244
    %1539 = vmatprep.subr.bf16.mxu0 %v1241
    %1540 = vmatpush2.bf16.msra.mxu0 %v1240
    %1541 = vmatprep.subr.bf16.mxu0 %v1237
    %1542 = vmatpush2.bf16.msra.mxu0 %v1236
    %1543 = vmatprep.subr.bf16.mxu0 %v1233
    %1544 = vmatpush2.bf16.msra.mxu0 %v1232
    %1545 = vmatprep.mubr.bf16.mxu0 %v599
    %1546 = vmatmul.mubr.bf16.gmra.mxu0 %v598
    %v1547 = vpop.f32.mrf.mxu0
    %v1548 = vadd.f32 %v1507, %v1547
    %v1549 = vpop.f32.mrf.mxu0
    %v1550 = vadd.f32 %v1509, %v1549
    %v1551 = vpop.f32.mrf.mxu0
    %v1552 = vpop.f32.mrf.mxu0
    %1553 = vdwg.mxu0
    %vm1554 = vcmp.gt.f32.partialorder %v1466, 0.0
    %vm1555 = vcmp.gt.f32.partialorder %v1468, 0.0
    %vm1556 = vcmp.gt.f32.partialorder %v1548, 0.0
    %vm1557 = vcmp.gt.f32.partialorder %v1550, 0.0
    %v1558 = vmul.f32 %v1466, 0.001
    %v1559 = vmul.f32 %v1468, 0.001
    %v1560 = vmul.f32 %v1548, 0.001
    %v1561 = vmul.f32 %v1550, 0.001
    %v1562 = vsel %vm1554, %v1466, %v1558
    %v1563 = vsel %vm1555, %v1468, %v1559
    %v1564 = vsel %vm1556, %v1548, %v1560
    %v1565 = vsel %vm1557, %v1550, %v1561
    %v1566 = vpack.c.bf16 %v1562, %v1562
    %v1567 = vpack.c.bf16 %v1563, %v1563
    %v1568 = vpack.c.bf16 %v1564, %v1564
    %v1569 = vpack.c.bf16 %v1565, %v1565
    %v1570 = vld [vmem:[#allocation10] sm:$0xf]
    %v1571 = vld [vmem:[#allocation10 + $0x4] sm:$0xf]
    %v1572 = vld [vmem:[#allocation10 + $0x8] sm:$0xf]
    %v1573 = vld [vmem:[#allocation10 + $0xc] sm:$0xf]
    %v1574 = vld [vmem:[#allocation10 + $0x10] sm:$0xf]
    %v1575 = vld [vmem:[#allocation10 + $0x14] sm:$0xf]
    %v1576 = vld [vmem:[#allocation10 + $0x18] sm:$0xf]
    %v1577 = vld [vmem:[#allocation10 + $0x1c] sm:$0xf]
    %v1578 = vld [vmem:[#allocation10 + $0x20] sm:$0xf]
    %v1579 = vld [vmem:[#allocation10 + $0x24] sm:$0xf]
    %v1580 = vld [vmem:[#allocation10 + $0x28] sm:$0xf]
    %v1581 = vld [vmem:[#allocation10 + $0x2c] sm:$0xf]
    %v1582 = vld [vmem:[#allocation10 + $0x30] sm:$0xf]
    %v1583 = vld [vmem:[#allocation10 + $0x34] sm:$0xf]
    %v1584 = vld [vmem:[#allocation10 + $0x38] sm:$0xf]
    %v1585 = vld [vmem:[#allocation10 + $0x3c] sm:$0xf]
    %v1586 = vld [vmem:[#allocation10 + $0x40] sm:$0xf]
    %v1587 = vld [vmem:[#allocation10 + $0x44] sm:$0xf]
    %v1588 = vld [vmem:[#allocation10 + $0x48] sm:$0xf]
    %v1589 = vld [vmem:[#allocation10 + $0x4c] sm:$0xf]
    %v1590 = vld [vmem:[#allocation10 + $0x50] sm:$0xf]
    %v1591 = vld [vmem:[#allocation10 + $0x54] sm:$0xf]
    %v1592 = vld [vmem:[#allocation10 + $0x58] sm:$0xf]
    %v1593 = vld [vmem:[#allocation10 + $0x5c] sm:$0xf]
    %v1594 = vld [vmem:[#allocation10 + $0x60] sm:$0xf]
    %v1595 = vld [vmem:[#allocation10 + $0x64] sm:$0xf]
    %v1596 = vld [vmem:[#allocation10 + $0x68] sm:$0xf]
    %v1597 = vld [vmem:[#allocation10 + $0x6c] sm:$0xf]
    %v1598 = vld [vmem:[#allocation10 + $0x70] sm:$0xf]
    %v1599 = vld [vmem:[#allocation10 + $0x74] sm:$0xf]
    %v1600 = vld [vmem:[#allocation10 + $0x78] sm:$0xf]
    %v1601 = vld [vmem:[#allocation10 + $0x7c] sm:$0xf]
    %v1602 = vld [vmem:[#allocation10 + $0x80] sm:$0xf]
    %v1603 = vld [vmem:[#allocation10 + $0x84] sm:$0xf]
    %v1604 = vld [vmem:[#allocation10 + $0x88] sm:$0xf]
    %v1605 = vld [vmem:[#allocation10 + $0x8c] sm:$0xf]
    %v1606 = vld [vmem:[#allocation10 + $0x90] sm:$0xf]
    %v1607 = vld [vmem:[#allocation10 + $0x94] sm:$0xf]
    %v1608 = vld [vmem:[#allocation10 + $0x98] sm:$0xf]
    %v1609 = vld [vmem:[#allocation10 + $0x9c] sm:$0xf]
    %v1610 = vld [vmem:[#allocation10 + $0xa0] sm:$0xf]
    %v1611 = vld [vmem:[#allocation10 + $0xa4] sm:$0xf]
    %v1612 = vld [vmem:[#allocation10 + $0xa8] sm:$0xf]
    %v1613 = vld [vmem:[#allocation10 + $0xac] sm:$0xf]
    %v1614 = vld [vmem:[#allocation10 + $0xb0] sm:$0xf]
    %v1615 = vld [vmem:[#allocation10 + $0xb4] sm:$0xf]
    %v1616 = vld [vmem:[#allocation10 + $0xb8] sm:$0xf]
    %v1617 = vld [vmem:[#allocation10 + $0xbc] sm:$0xf]
    %v1618 = vld [vmem:[#allocation10 + $0xc0] sm:$0xf]
    %v1619 = vld [vmem:[#allocation10 + $0xc4] sm:$0xf]
    %v1620 = vld [vmem:[#allocation10 + $0xc8] sm:$0xf]
    %v1621 = vld [vmem:[#allocation10 + $0xcc] sm:$0xf]
    %v1622 = vld [vmem:[#allocation10 + $0xd0] sm:$0xf]
    %v1623 = vld [vmem:[#allocation10 + $0xd4] sm:$0xf]
    %v1624 = vld [vmem:[#allocation10 + $0xd8] sm:$0xf]
    %v1625 = vld [vmem:[#allocation10 + $0xdc] sm:$0xf]
    %v1626 = vld [vmem:[#allocation10 + $0xe0] sm:$0xf]
    %v1627 = vld [vmem:[#allocation10 + $0xe4] sm:$0xf]
    %v1628 = vld [vmem:[#allocation10 + $0xe8] sm:$0xf]
    %v1629 = vld [vmem:[#allocation10 + $0xec] sm:$0xf]
    %v1630 = vld [vmem:[#allocation10 + $0xf0] sm:$0xf]
    %v1631 = vld [vmem:[#allocation10 + $0xf4] sm:$0xf]
    %v1632 = vld [vmem:[#allocation10 + $0xf8] sm:$0xf]
    %v1633 = vld [vmem:[#allocation10 + $0xfc] sm:$0xf]
    %v1634 = vld [vmem:[%s6] sm:$0x1]
    %v1636 = vlaneseq
    %v1637 = vshrl.u32 %v1636, 7
    %v1638 = vsub.s32 0, %v1637
    %v1639 = vrot.slane %v1634, %v1638
    %v1705 = vunpack.c.l.b16 %v1570
    %v1706 = vunpack.c.l.b16 %v1571
    %v1707 = vunpack.c.l.b16 %v1572
    %v1708 = vunpack.c.l.b16 %v1573
    %v1709 = vunpack.c.l.b16 %v1574
    %v1710 = vunpack.c.l.b16 %v1575
    %v1711 = vunpack.c.l.b16 %v1576
    %v1712 = vunpack.c.l.b16 %v1577
    %v1713 = vunpack.c.l.b16 %v1578
    %v1714 = vunpack.c.l.b16 %v1579
    %v1715 = vunpack.c.l.b16 %v1580
    %v1716 = vunpack.c.l.b16 %v1581
    %v1717 = vunpack.c.l.b16 %v1582
    %v1718 = vunpack.c.l.b16 %v1583
    %v1719 = vunpack.c.l.b16 %v1584
    %v1720 = vunpack.c.l.b16 %v1585
    %v1721 = vunpack.c.l.b16 %v1586
    %v1722 = vunpack.c.l.b16 %v1587
    %v1723 = vunpack.c.l.b16 %v1588
    %v1724 = vunpack.c.l.b16 %v1589
    %v1725 = vunpack.c.l.b16 %v1590
    %v1726 = vunpack.c.l.b16 %v1591
    %v1727 = vunpack.c.l.b16 %v1592
    %v1728 = vunpack.c.l.b16 %v1593
    %v1729 = vunpack.c.l.b16 %v1594
    %v1730 = vunpack.c.l.b16 %v1595
    %v1731 = vunpack.c.l.b16 %v1596
    %v1732 = vunpack.c.l.b16 %v1597
    %v1733 = vunpack.c.l.b16 %v1598
    %v1734 = vunpack.c.l.b16 %v1599
    %v1735 = vunpack.c.l.b16 %v1600
    %v1736 = vunpack.c.l.b16 %v1601
    %v1737 = vunpack.c.l.b16 %v1602
    %v1738 = vunpack.c.l.b16 %v1603
    %v1739 = vunpack.c.l.b16 %v1604
    %v1740 = vunpack.c.l.b16 %v1605
    %v1741 = vunpack.c.l.b16 %v1606
    %v1742 = vunpack.c.l.b16 %v1607
    %v1743 = vunpack.c.l.b16 %v1608
    %v1744 = vunpack.c.l.b16 %v1609
    %v1745 = vunpack.c.l.b16 %v1610
    %v1746 = vunpack.c.l.b16 %v1611
    %v1747 = vunpack.c.l.b16 %v1612
    %v1748 = vunpack.c.l.b16 %v1613
    %v1749 = vunpack.c.l.b16 %v1614
    %v1750 = vunpack.c.l.b16 %v1615
    %v1751 = vunpack.c.l.b16 %v1616
    %v1752 = vunpack.c.l.b16 %v1617
    %v1753 = vunpack.c.l.b16 %v1618
    %v1754 = vunpack.c.l.b16 %v1619
    %v1755 = vunpack.c.l.b16 %v1620
    %v1756 = vunpack.c.l.b16 %v1621
    %v1757 = vunpack.c.l.b16 %v1622
    %v1758 = vunpack.c.l.b16 %v1623
    %v1759 = vunpack.c.l.b16 %v1624
    %v1760 = vunpack.c.l.b16 %v1625
    %v1761 = vunpack.c.l.b16 %v1626
    %v1762 = vunpack.c.l.b16 %v1627
    %v1763 = vunpack.c.l.b16 %v1628
    %v1764 = vunpack.c.l.b16 %v1629
    %v1765 = vunpack.c.l.b16 %v1630
    %v1766 = vunpack.c.l.b16 %v1631
    %v1767 = vunpack.c.l.b16 %v1632
    %v1768 = vunpack.c.l.b16 %v1633
    %v1769 = vpack.c.b16 %v1706, %v1705
    %v1770 = vpack.c.b16 %v1708, %v1707
    %v1771 = vpack.c.b16 %v1710, %v1709
    %v1772 = vpack.c.b16 %v1712, %v1711
    %v1773 = vpack.c.b16 %v1714, %v1713
    %v1774 = vpack.c.b16 %v1716, %v1715
    %v1775 = vpack.c.b16 %v1718, %v1717
    %v1776 = vpack.c.b16 %v1720, %v1719
    %v1777 = vpack.c.b16 %v1722, %v1721
    %v1778 = vpack.c.b16 %v1724, %v1723
    %v1779 = vpack.c.b16 %v1726, %v1725
    %v1780 = vpack.c.b16 %v1728, %v1727
    %v1781 = vpack.c.b16 %v1730, %v1729
    %v1782 = vpack.c.b16 %v1732, %v1731
    %v1783 = vpack.c.b16 %v1734, %v1733
    %v1784 = vpack.c.b16 %v1736, %v1735
    %v1785 = vpack.c.b16 %v1738, %v1737
    %v1786 = vpack.c.b16 %v1740, %v1739
    %v1787 = vpack.c.b16 %v1742, %v1741
    %v1788 = vpack.c.b16 %v1744, %v1743
    %v1789 = vpack.c.b16 %v1746, %v1745
    %v1790 = vpack.c.b16 %v1748, %v1747
    %v1791 = vpack.c.b16 %v1750, %v1749
    %v1792 = vpack.c.b16 %v1752, %v1751
    %v1793 = vpack.c.b16 %v1754, %v1753
    %v1794 = vpack.c.b16 %v1756, %v1755
    %v1795 = vpack.c.b16 %v1758, %v1757
    %v1796 = vpack.c.b16 %v1760, %v1759
    %v1797 = vpack.c.b16 %v1762, %v1761
    %v1798 = vpack.c.b16 %v1764, %v1763
    %v1799 = vpack.c.b16 %v1766, %v1765
    %v1800 = vpack.c.b16 %v1768, %v1767
    %1833 = vmatprep.subr.bf16.mxu0 0
    %1834 = vmatpush1.bf16.msra.mxu0 %v1776
    %1835 = vmatprep.subr.bf16.mxu0 0
    %1836 = vmatpush1.bf16.msra.mxu0 %v1775
    %1837 = vmatprep.subr.bf16.mxu0 0
    %1838 = vmatpush1.bf16.msra.mxu0 %v1774
    %1839 = vmatprep.subr.bf16.mxu0 0
    %1840 = vmatpush1.bf16.msra.mxu0 %v1773
    %1841 = vmatprep.subr.bf16.mxu0 0
    %1842 = vmatpush1.bf16.msra.mxu0 %v1772
    %1843 = vmatprep.subr.bf16.mxu0 0
    %1844 = vmatpush1.bf16.msra.mxu0 %v1771
    %1845 = vmatprep.subr.bf16.mxu0 0
    %1846 = vmatpush1.bf16.msra.mxu0 %v1770
    %1847 = vmatprep.subr.bf16.mxu0 0
    %1848 = vmatpush1.bf16.msra.mxu0 %v1769
    %1849 = vmatprep.subr.bf16.mxu0 0
    %1850 = vmatpush2.bf16.msra.mxu0 %v1784
    %1851 = vmatprep.subr.bf16.mxu0 0
    %1852 = vmatpush2.bf16.msra.mxu0 %v1783
    %1853 = vmatprep.subr.bf16.mxu0 0
    %1854 = vmatpush2.bf16.msra.mxu0 %v1782
    %1855 = vmatprep.subr.bf16.mxu0 0
    %1856 = vmatpush2.bf16.msra.mxu0 %v1781
    %1857 = vmatprep.subr.bf16.mxu0 0
    %1858 = vmatpush2.bf16.msra.mxu0 %v1780
    %1859 = vmatprep.subr.bf16.mxu0 0
    %1860 = vmatpush2.bf16.msra.mxu0 %v1779
    %1861 = vmatprep.subr.bf16.mxu0 0
    %1862 = vmatpush2.bf16.msra.mxu0 %v1778
    %1863 = vmatprep.subr.bf16.mxu0 0
    %1864 = vmatpush2.bf16.msra.mxu0 %v1777
    %1865 = vmatprep.mubr.bf16.mxu0 %v1567
    %1866 = vmatmul.mubr.bf16.gmra.mxu0 %v1566
    %v1867 = vpop.f32.mrf.mxu0
    %v1868 = vadd.f32 %v1639, %v1867
    %v1869 = vpop.f32.mrf.mxu0
    %v1870 = vpop.f32.mrf.mxu0
    %v1871 = vpop.f32.mrf.mxu0
    %1872 = vdwg.mxu0
    %1873 = vmatprep.subr.bf16.mxu0 0
    %1874 = vmatpush1.bf16.msra.mxu0 %v1792
    %1875 = vmatprep.subr.bf16.mxu0 0
    %1876 = vmatpush1.bf16.msra.mxu0 %v1791
    %1877 = vmatprep.subr.bf16.mxu0 0
    %1878 = vmatpush1.bf16.msra.mxu0 %v1790
    %1879 = vmatprep.subr.bf16.mxu0 0
    %1880 = vmatpush1.bf16.msra.mxu0 %v1789
    %1881 = vmatprep.subr.bf16.mxu0 0
    %1882 = vmatpush1.bf16.msra.mxu0 %v1788
    %1883 = vmatprep.subr.bf16.mxu0 0
    %1884 = vmatpush1.bf16.msra.mxu0 %v1787
    %1885 = vmatprep.subr.bf16.mxu0 0
    %1886 = vmatpush1.bf16.msra.mxu0 %v1786
    %1887 = vmatprep.subr.bf16.mxu0 0
    %1888 = vmatpush1.bf16.msra.mxu0 %v1785
    %1889 = vmatprep.subr.bf16.mxu0 0
    %1890 = vmatpush2.bf16.msra.mxu0 %v1800
    %1891 = vmatprep.subr.bf16.mxu0 0
    %1892 = vmatpush2.bf16.msra.mxu0 %v1799
    %1893 = vmatprep.subr.bf16.mxu0 0
    %1894 = vmatpush2.bf16.msra.mxu0 %v1798
    %1895 = vmatprep.subr.bf16.mxu0 0
    %1896 = vmatpush2.bf16.msra.mxu0 %v1797
    %1897 = vmatprep.subr.bf16.mxu0 0
    %1898 = vmatpush2.bf16.msra.mxu0 %v1796
    %1899 = vmatprep.subr.bf16.mxu0 0
    %1900 = vmatpush2.bf16.msra.mxu0 %v1795
    %1901 = vmatprep.subr.bf16.mxu0 0
    %1902 = vmatpush2.bf16.msra.mxu0 %v1794
    %1903 = vmatprep.subr.bf16.mxu0 0
    %1904 = vmatpush2.bf16.msra.mxu0 %v1793
    %1905 = vmatprep.mubr.bf16.mxu0 %v1569
    %1906 = vmatmul.mubr.bf16.gmra.mxu0 %v1568
    %v1907 = vpop.f32.mrf.mxu0
    %v1908 = vadd.f32 %v1868, %v1907
    %v1909 = vpop.f32.mrf.mxu0
    %v1910 = vpop.f32.mrf.mxu0
    %v1911 = vpop.f32.mrf.mxu0
    %1912 = vdwg.mxu0
    %1913 = vst [vmem:[#allocation11] sm:$0xff] %v1908
    // Predicated region
    $region50: #{tpu_custom_call.1} parent=1 // pred_check
      _
    $region51: #{tpu_custom_call.1} parent=1 // pred_check_branch
      %1915 = sbr.rel (0) target = $region53
    $region52: #{tpu_custom_call.1} parent=1 // pred_region
      %s1917 = ssub.s32 128, 128
      %1918 = vsyncadd [#allocation4], %s1917
      %s1920 = sshll.u32 [#allocation11], 4
      %s1921 = int_to_ptr.vmem [resolvable:$true] %s1920
      %1923 = dma.vmem_to_hbm [thread:$0]  %s1921, 128, %s7, [#allocation4]
    $region53: #{tpu_custom_call.1} parent=1 // pred_fallthru
      _
    // Predicated region
    $region54: #{tpu_custom_call.1} parent=1 // pred_check
      _
    $region55: #{tpu_custom_call.1} parent=1 // pred_check_branch
      %1925 = sbr.rel (0) target = $region57
    $region56: #{tpu_custom_call.1} parent=1 // pred_region
      %1926 = dma.done [#allocation4], 128
    $region57: #{tpu_custom_call.1} parent=1 // pred_fallthru
      _
    %1927 = vsyncpa [#allocation3], 1
    %1928 = vsyncpa [#allocation6], 1
    %1929 = vsyncpa [#allocation9], 1
    %1930 = vsyncpa [#allocation4], 1

</llo_original>
